<compile_context>
chip_gen: v5e
topology: v5e:2x2
jax: 0.10.0
libtpu: 0.0.40
codegen_flags: <defaults>
</compile_context>

<pallas_src>
import math
import functools

import numpy as np
import jax
import jax.numpy as jnp
from jax.experimental import pallas as pl
from jax.experimental.pallas import tpu as pltpu


def _layernorm(x, scale, shift, eps=1e-5):
    # x: (rows, D) fp32; scale/shift: (1, D) fp32; unbiased=False variance.
    mean = jnp.mean(x, axis=-1, keepdims=True)
    var = jnp.mean((x - mean) ** 2, axis=-1, keepdims=True)
    return scale * ((x - mean) * jax.lax.rsqrt(var + eps)) + shift


def _transformer_block_kernel(
    x_ref,       # (TQ, D)  input rows of this q-tile (input dtype)
    ln1_s_ref,   # (1, D)   f32
    ln1_b_ref,   # (1, D)   f32
    wqkv_ref,    # (D, 3D)  compute dtype  [Wq | Wk | Wv]
    wo_ref,      # (D, D)   compute dtype
    bo_ref,      # (1, D)   f32
    ln2_s_ref,   # (1, D)   f32
    ln2_b_ref,   # (1, D)   f32
    w_rff_ref,   # (D, R)   compute dtype
    b_rff_ref,   # (1, R)   f32
    w_out_ref,   # (R, D)   compute dtype
    b_out_ref,   # (1, D)   f32
    o_ref,       # (TQ, D)  output tile
    k_scr,       # (L, D)   compute dtype scratch (K cache, built incrementally)
    v_scr,       # (L, D)   compute dtype scratch (V cache, built incrementally)
    ctx_scr,     # (TQ, D)  fp32 scratch for per-head context writes
    *,
    num_heads: int,
    approx_recip: bool,
):
    cdt = k_scr.dtype
    L, D = k_scr.shape
    tq = o_ref.shape[0]
    R = w_rff_ref.shape[1]
    H = num_heads
    hd = D // H
    qi = pl.program_id(1)
    q_start = pl.multiple_of(qi * tq, tq)

    # ---- LN1 + fused QKV for THIS tile's rows; append K/V to the caches ----
    x_q = x_ref[...].astype(jnp.float32)                             # (TQ, D)
    xn_q = _layernorm(x_q, ln1_s_ref[...], ln1_b_ref[...])
    qkv = jnp.dot(xn_q.astype(cdt), wqkv_ref[...],
                  preferred_element_type=jnp.float32)                # (TQ, 3D)
    # Fold 1/sqrt(head_dim) into Q (cheaper than scaling scores).
    q_t = (qkv[:, :D] * jnp.float32(1.0 / math.sqrt(hd))).astype(cdt)
    k_scr[pl.ds(q_start, tq), :] = qkv[:, D:2 * D].astype(cdt)
    v_scr[pl.ds(q_start, tq), :] = qkv[:, 2 * D:].astype(cdt)

    # Additive causal mask for the DIAGONAL chunk only (finite bias; fp32).
    row = jax.lax.broadcasted_iota(jnp.int32, (tq, tq), 0)
    col = jax.lax.broadcasted_iota(jnp.int32, (tq, tq), 1)
    diag_bias = jnp.where(col > row, jnp.float32(-1e30), jnp.float32(0.0))

    # ---- per-head online-softmax over causal KV chunks 0..qi ----
    for h in range(H):                       # static unroll (small H; see TODO)
        sl0 = h * hd
        q_h = q_t[:, sl0:sl0 + hd]           # (TQ, hd)

        def body(c, carry, q_h=q_h, sl0=sl0):
            m, l, acc = carry
            off = pl.multiple_of(c * tq, tq)
            k_c = k_scr[pl.ds(off, tq), sl0:sl0 + hd]        # (TQ, hd)
            v_c = v_scr[pl.ds(off, tq), sl0:sl0 + hd]        # (TQ, hd)
            # q_h @ k_c^T via contracting dims (no materialized transpose).
            s = jax.lax.dot_general(q_h, k_c, (((1,), (1,)), ((), ())),
                                    preferred_element_type=jnp.float32)
            s = jnp.where(c == qi, s + diag_bias, s)         # mask only diag
            m_new = jnp.maximum(m, jnp.max(s, axis=-1, keepdims=True))
            alpha = jnp.exp(m - m_new)
            p = jnp.exp(s - m_new)
            l_new = alpha * l + jnp.sum(p, axis=-1, keepdims=True)
            acc_new = alpha * acc + jnp.dot(p.astype(cdt), v_c,
                                            preferred_element_type=jnp.float32)
            return m_new, l_new, acc_new

        m0 = jnp.full((tq, 1), -1e30, jnp.float32)
        l0 = jnp.zeros((tq, 1), jnp.float32)
        a0 = jnp.zeros((tq, hd), jnp.float32)
        m, l, acc = jax.lax.fori_loop(0, qi + 1, body, (m0, l0, a0))

        if approx_recip:
            inv = pl.reciprocal(l, approx=True)   # EUP slot; bf16 path only
        else:
            inv = 1.0 / l                         # exact for fp32 check path
        # Write into scratch at a static lane offset (no concatenate).
        ctx_scr[:, sl0:sl0 + hd] = acc * inv

    ctx = ctx_scr[...]                                               # (TQ, D)
    att = jnp.dot(ctx.astype(cdt), wo_ref[...],
                  preferred_element_type=jnp.float32) + bo_ref[...]
    x1 = att + x_q                                 # residual 1 (dropout = id)

    # ---- LayerNorm 2 + RFF kernel FFN ----
    x2n = _layernorm(x1, ln2_s_ref[...], ln2_b_ref[...])
    proj = jnp.dot(x2n.astype(cdt), w_rff_ref[...],
                   preferred_element_type=jnp.float32) + b_rff_ref[...]
    rff = jnp.float32(math.sqrt(2.0 / R)) * jnp.cos(proj)            # (TQ, R)
    ff = jnp.dot(rff.astype(cdt), w_out_ref[...],
                 preferred_element_type=jnp.float32) + b_out_ref[...]

    o_ref[...] = (ff + x1).astype(o_ref.dtype)     # residual 2 (dropout = id)


# ---------------------------------------------------------------------------
# One-time cached capability / hardware probes (no per-call try/except builds).
# ---------------------------------------------------------------------------
def _copy_kernel(x_ref, o_ref):
    o_ref[...] = x_ref[...]


@functools.lru_cache(maxsize=None)
def _single_buffer_weights_supported():
    """Probe once whether pl.Buffered(1) blocks compile & run on this jax."""
    try:
        f = pl.pallas_call(
            _copy_kernel,
            out_shape=jax.ShapeDtypeStruct((8, 128), jnp.float32),
            grid=(2,),
            in_specs=[pl.BlockSpec((8, 128), lambda i: (0, 0),
                                   pipeline_mode=pl.Buffered(1))],
            out_specs=pl.BlockSpec((8, 128), lambda i: (0, 0)),
        )
        jax.block_until_ready(f(jnp.zeros((8, 128), jnp.float32)))
        return True
    except Exception:
        return False


@functools.lru_cache(maxsize=None)
def _vmem_budget_bytes():
    """Per-generation VMEM limit: ~100 MiB on 128 MiB parts, ~54 MiB on v7x."""
    try:
        cap = int(pltpu.get_tpu_info().vmem_capacity_bytes)
    except Exception:
        cap = 64 * 1024 * 1024   # assume the tightest part (v7x per-TC)
    return min(int(cap * 0.85), 100 * 1024 * 1024)


def _pick_q_tile(L, max_tile):
    for cand in (512, 256, 128, 64, 32, 16, 8):
        if cand <= max_tile and cand <= L and L % cand == 0:
            return cand
    return L  # block dim == full array dim is always allowed


# ---------------------------------------------------------------------------
# Jitted implementation (traced once per static config).
# ---------------------------------------------------------------------------
@functools.partial(
    jax.jit,
    static_argnames=("num_heads", "compute_dtype", "interpret",
                     "single_buffer_weights", "vmem_limit_bytes", "max_q_tile"))
def _transformer_block_rff_impl(x, params, *, num_heads, compute_dtype,
                                interpret, single_buffer_weights,
                                vmem_limit_bytes, max_q_tile):
    B, L, D = x.shape
    R = params["w_rff"].shape[1]
    assert D % num_heads == 0
    tq = _pick_q_tile(L, max_q_tile)
    nq = L // tq
    f32 = jnp.float32
    approx_recip = np.dtype(compute_dtype) != np.dtype(np.float32)

    # Fused QKV weight; MXU inputs in compute_dtype (bf16 by default).
    wqkv = jnp.concatenate([params["wq"], params["wk"], params["wv"]],
                           axis=1).astype(compute_dtype)
    operands = (
        x,
        params["ln1_scale"].astype(f32), params["ln1_shift"].astype(f32),
        wqkv,
        params["wo"].astype(compute_dtype), params["bo"].astype(f32),
        params["ln2_scale"].astype(f32), params["ln2_shift"].astype(f32),
        params["w_rff"].astype(compute_dtype), params["b_rff"].astype(f32),
        params["w_out"].astype(compute_dtype), params["b_out"].astype(f32),
    )

    # Advisory cost hint (causal attention ~ halves the L^2 terms).
    flops = B * (2 * L * D * 3 * D       # fused QKV
                 + 2 * L * L * D         # causal scores + context
                 + 2 * L * D * D         # out_proj
                 + 4 * L * D * R)        # RFF projection + linear_out
    transcendentals = B * (num_heads * L * L // 2 + L * R)
    bytes_accessed = (x.size * x.dtype.itemsize
                      + sum(int(o.size) * o.dtype.itemsize for o in operands[1:])
                      + B * L * D * x.dtype.itemsize)

    kernel = functools.partial(_transformer_block_kernel,
                               num_heads=num_heads, approx_recip=approx_recip)

    if single_buffer_weights:
        def wspec(shape):
            # constant block index -> single buffer (halves weight VMEM).
            return pl.BlockSpec(shape, lambda b, q: (0, 0),
                                pipeline_mode=pl.Buffered(1))
    else:
        def wspec(shape):
            return pl.BlockSpec(shape, lambda b, q: (0, 0))

    grid_spec = pltpu.PrefetchScalarGridSpec(
        num_scalar_prefetch=0,
        grid=(B, nq),
        in_specs=[
            pl.BlockSpec((None, tq, D), lambda b, q: (b, q, 0)),  # x (per tile)
            wspec((1, D)), wspec((1, D)),                         # ln1 scale/shift
            wspec((D, 3 * D)),                                    # fused Wqkv
            wspec((D, D)), wspec((1, D)),                         # Wo, bo
            wspec((1, D)), wspec((1, D)),                         # ln2 scale/shift
            wspec((D, R)), wspec((1, R)),                         # W_rff, b_rff
            wspec((R, D)), wspec((1, D)),                         # W_out, b_out
        ],
        out_specs=pl.BlockSpec((None, tq, D), lambda b, q: (b, q, 0)),
        scratch_shapes=[
            pltpu.VMEM((L, D), compute_dtype),   # K cache (persists across q)
            pltpu.VMEM((L, D), compute_dtype),   # V cache (persists across q)
            pltpu.VMEM((tq, D), jnp.float32),    # per-tile context scratch
        ],
    )
    return pl.pallas_call(
        kernel,
        out_shape=jax.ShapeDtypeStruct((B, L, D), x.dtype),
        grid_spec=grid_spec,
        compiler_params=pltpu.CompilerParams(
            # Batch axis shards across cores; q axis MUST stay sequential and
            # in-order so the incremental K/V cache is valid.
            dimension_semantics=("parallel", "arbitrary"),
            vmem_limit_bytes=int(vmem_limit_bytes),
        ),
        cost_estimate=pl.CostEstimate(
            flops=int(flops),
            transcendentals=int(transcendentals),
            bytes_accessed=int(bytes_accessed),
        ),
        interpret=interpret,
    )(*operands)


def transformer_block_rff(x, params, *, num_heads,
                          compute_dtype=jnp.bfloat16, interpret=False):
    vmem_budget = _vmem_budget_bytes()
    # Larger resident tiles on 128 MiB parts (v5e/v6e); tighter on v7x.
    max_q_tile = 512 if vmem_budget >= 96 * 1024 * 1024 else 256
    single_buffer = (not interpret) and _single_buffer_weights_supported()
    return _transformer_block_rff_impl(
        x, params, num_heads=num_heads, compute_dtype=compute_dtype,
        interpret=interpret, single_buffer_weights=single_buffer,
        vmem_limit_bytes=vmem_budget, max_q_tile=max_q_tile)


# ---------------------------------------------------------------------------
# Pure-JAX fp32 reference mirroring the PyTorch module (eval mode).
# ---------------------------------------------------------------------------
def reference_forward(x, params, *, num_heads):
    B, L, D = x.shape
    H = num_heads
    hd = D // H

    def ln(v, s, b):
        m = jnp.mean(v, -1, keepdims=True)
        var = jnp.mean((v - m) ** 2, -1, keepdims=True)
        return s * ((v - m) / jnp.sqrt(var + 1e-5)) + b

    xn = ln(x, params["ln1_scale"], params["ln1_shift"])
    q = (xn @ params["wq"]).reshape(B, L, H, hd).transpose(0, 2, 1, 3)
    k = (xn @ params["wk"]).reshape(B, L, H, hd).transpose(0, 2, 1, 3)
    v = (xn @ params["wv"]).reshape(B, L, H, hd).transpose(0, 2, 1, 3)
    s = jnp.einsum("bhld,bhmd->bhlm", q, k) / math.sqrt(hd)
    mask = jnp.triu(jnp.ones((L, L), bool), k=1)
    s = jnp.where(mask, -jnp.inf, s)
    a = jax.nn.softmax(s, axis=-1)
    ctx = jnp.einsum("bhlm,bhmd->bhld", a, v).transpose(0, 2, 1, 3).reshape(B, L, D)
    att = ctx @ params["wo"] + params["bo"]
    x1 = att + x
    x2n = ln(x1, params["ln2_scale"], params["ln2_shift"])
    proj = x2n @ params["w_rff"] + params["b_rff"]
    rff = math.sqrt(2.0 / params["w_rff"].shape[1]) * jnp.cos(proj)
    ff = rff @ params["w_out"] + params["b_out"]
    return ff + x1


def init_params(key, emb_dim, rff_dim, sigma=1.0):
    ks = jax.random.split(key, 8)
    D, R = emb_dim, rff_dim
    scale = 1.0 / math.sqrt(D)
    return {
        "ln1_scale": jnp.ones((1, D), jnp.float32),
        "ln1_shift": jnp.zeros((1, D), jnp.float32),
        "ln2_scale": jnp.ones((1, D), jnp.float32),
        "ln2_shift": jnp.zeros((1, D), jnp.float32),
        # Linear weights stored (in, out): y = x @ W + b (== torch x @ W.T).
        "wq": jax.random.normal(ks[0], (D, D), jnp.float32) * scale,
        "wk": jax.random.normal(ks[1], (D, D), jnp.float32) * scale,
        "wv": jax.random.normal(ks[2], (D, D), jnp.float32) * scale,
        "wo": jax.random.normal(ks[3], (D, D), jnp.float32) * scale,
        "bo": jnp.zeros((1, D), jnp.float32),
        # RFF params: W ~ N(0,1)/sigma, b ~ U(0, 2*pi)  (non-trainable)
        "w_rff": jax.random.normal(ks[4], (D, R), jnp.float32) / sigma,
        "b_rff": 2.0 * math.pi * jax.random.uniform(ks[5], (1, R), jnp.float32),
        "w_out": jax.random.normal(ks[6], (R, D), jnp.float32) * (1.0 / math.sqrt(R)),
        "b_out": jnp.zeros((1, D), jnp.float32),
    }


if __name__ == "__main__":
    # cfg: emb_dim=32, context_length=8, n_heads=4, drop_rate=0.0,
    #      qkv_bias=False, sigma=1.0, rff_dim=4*emb_dim=128
    B, L, D, H = 2, 8, 32, 4
    R = 4 * D

    key = jax.random.PRNGKey(0)
    k_x, k_p = jax.random.split(key)
    x = jax.random.normal(k_x, (B, L, D), jnp.float32)
    params = init_params(k_p, D, R, sigma=1.0)

    # Correctness: fp32 compute path (exact reciprocal) vs pure-JAX reference.
    out_f32 = jax.block_until_ready(
        transformer_block_rff(x, params, num_heads=H, compute_dtype=jnp.float32))
    ref = jax.block_until_ready(reference_forward(x, params, num_heads=H))
    max_err = float(jnp.max(jnp.abs(out_f32 - ref)))
    assert max_err < 2e-3, f"kernel/reference mismatch: max_err={max_err}"

    # Performance configuration: bf16 MXU inputs, fp32 accumulation.
    out = jax.block_until_ready(transformer_block_rff(x, params, num_heads=H))
    assert out.shape == (B, L, D)
    assert bool(jnp.all(jnp.isfinite(out)))
    print("KERNEL_OK")
</pallas_src>

<mosaic_0001>
module attributes {stable_mosaic.version = 11 : i64} {
  func.func @_copy_kernel(%arg0: i32, %arg1: memref<8x128xf32, #tpu.memory_space<vmem>>, %arg2: memref<8x128xf32, #tpu.memory_space<vmem>>) attributes {dimension_semantics = [#tpu.dimension_semantics<arbitrary>], iteration_bounds = array<i64: 2>, scalar_prefetch = 0 : i64, scratch_operands = 0 : i64, tpu.core_type = #tpu.core_type<tc>, window_params = [{pipeline_mode = #tpu.pipeline_mode<synchronous>, transform_indices = @transform_0, window_bounds = array<i64: 8, 128>}, {pipeline_mode = #tpu.pipeline_mode<synchronous>, transform_indices = @transform_1, window_bounds = array<i64: 8, 128>}]} {
    %c0 = arith.constant 0 : index
    %c0_0 = arith.constant 0 : index
    %0 = vector.load %arg1[%c0, %c0_0] : memref<8x128xf32, #tpu.memory_space<vmem>>, vector<8x128xf32>
    %c0_1 = arith.constant 0 : index
    %c0_2 = arith.constant 0 : index
    %1 = vector.load %arg2[%c0_1, %c0_2] : memref<8x128xf32, #tpu.memory_space<vmem>>, vector<8x128xf32>
    tpu.vector_store %arg2[%c0_1, %c0_2], %0 {strides = array<i32>} : memref<8x128xf32, #tpu.memory_space<vmem>>, vector<8x128xf32>,
    return
  }
  func.func @transform_0(%arg0: i32) -> (i32, i32) {
    %c0_i32 = arith.constant 0 : i32
    %c0_i32_0 = arith.constant 0 : i32
    %c0_i32_1 = arith.constant 0 : i32
    return %c0_i32, %c0_i32_0 : i32, i32
  }
  func.func @transform_1(%arg0: i32) -> (i32, i32) {
    %c0_i32 = arith.constant 0 : i32
    %c0_i32_0 = arith.constant 0 : i32
    %c0_i32_1 = arith.constant 0 : i32
    return %c0_i32, %c0_i32_0 : i32, i32
  }
}

module attributes {stable_mosaic.version = 11 : i64} {
  func.func @_transformer_block_kernel(%arg0: i32, %arg1: i32, %arg2: memref<1x8x32xf32, #tpu.memory_space<vmem>>, %arg3: memref<1x32xf32, #tpu.memory_space<vmem>>, %arg4: memref<1x32xf32, #tpu.memory_space<vmem>>, %arg5: memref<32x96xf32, #tpu.memory_space<vmem>>, %arg6: memref<32x32xf32, #tpu.memory_space<vmem>>, %arg7: memref<1x32xf32, #tpu.memory_space<vmem>>, %arg8: memref<1x32xf32, #tpu.memory_space<vmem>>, %arg9: memref<1x32xf32, #tpu.memory_space<vmem>>, %arg10: memref<32x128xf32, #tpu.memory_space<vmem>>, %arg11: memref<1x128xf32, #tpu.memory_space<vmem>>, %arg12: memref<128x32xf32, #tpu.memory_space<vmem>>, %arg13: memref<1x32xf32, #tpu.memory_space<vmem>>, %arg14: memref<1x8x32xf32, #tpu.memory_space<vmem>>, %arg15: memref<8x32xf32, #tpu.memory_space<vmem>>, %arg16: memref<8x32xf32, #tpu.memory_space<vmem>>, %arg17: memref<8x32xf32, #tpu.memory_space<vmem>>) attributes {dimension_semantics = [#tpu.dimension_semantics<parallel>, #tpu.dimension_semantics<arbitrary>], iteration_bounds = array<i64: 2, 1>, scalar_prefetch = 0 : i64, scratch_operands = 3 : i64, tpu.core_type = #tpu.core_type<tc>, window_params = [{transform_indices = @transform_0, window_bounds = array<i64: 1, 8, 32>}, {pipeline_mode = #tpu.pipeline_mode<synchronous>, transform_indices = @transform_1, window_bounds = array<i64: 1, 32>}, {pipeline_mode = #tpu.pipeline_mode<synchronous>, transform_indices = @transform_2, window_bounds = array<i64: 1, 32>}, {pipeline_mode = #tpu.pipeline_mode<synchronous>, transform_indices = @transform_3, window_bounds = array<i64: 32, 96>}, {pipeline_mode = #tpu.pipeline_mode<synchronous>, transform_indices = @transform_4, window_bounds = array<i64: 32, 32>}, {pipeline_mode = #tpu.pipeline_mode<synchronous>, transform_indices = @transform_5, window_bounds = array<i64: 1, 32>}, {pipeline_mode = #tpu.pipeline_mode<synchronous>, transform_indices = @transform_6, window_bounds = array<i64: 1, 32>}, {pipeline_mode = #tpu.pipeline_mode<synchronous>, transform_indices = @transform_7, window_bounds = array<i64: 1, 32>}, {pipeline_mode = #tpu.pipeline_mode<synchronous>, transform_indices = @transform_8, window_bounds = array<i64: 32, 128>}, {pipeline_mode = #tpu.pipeline_mode<synchronous>, transform_indices = @transform_9, window_bounds = array<i64: 1, 128>}, {pipeline_mode = #tpu.pipeline_mode<synchronous>, transform_indices = @transform_10, window_bounds = array<i64: 128, 32>}, {pipeline_mode = #tpu.pipeline_mode<synchronous>, transform_indices = @transform_11, window_bounds = array<i64: 1, 32>}, {transform_indices = @transform_12, window_bounds = array<i64: 1, 8, 32>}]} {
    %c8_i32 = arith.constant 8 : i32
    %0 = arith.muli %arg1, %c8_i32 : i32
    %1 = tpu.assume_multiple %0, 8 : i32
    %c0 = arith.constant 0 : index
    %c0_0 = arith.constant 0 : index
    %c0_1 = arith.constant 0 : index
    %2 = vector.load %arg2[%c0, %c0_0, %c0_1] : memref<1x8x32xf32, #tpu.memory_space<vmem>>, vector<1x8x32xf32>
    %3 = vector.shape_cast %2 : vector<1x8x32xf32> to vector<8x32xf32>
    %c0_2 = arith.constant 0 : index
    %c0_3 = arith.constant 0 : index
    %4 = vector.load %arg3[%c0_2, %c0_3] : memref<1x32xf32, #tpu.memory_space<vmem>>, vector<1x32xf32>
    %c0_4 = arith.constant 0 : index
    %c0_5 = arith.constant 0 : index
    %5 = vector.load %arg4[%c0_4, %c0_5] : memref<1x32xf32, #tpu.memory_space<vmem>>, vector<1x32xf32>
    %cst = arith.constant dense<0.000000e+00> : vector<8xf32>
    %6 = vector.multi_reduction <add>, %3, %cst [1] : vector<8x32xf32> to vector<8xf32>
    %7 = vector.shape_cast %6 : vector<8xf32> to vector<8x1xf32>
    %cst_6 = arith.constant 3.200000e+01 : f32
    %8 = vector.broadcast %cst_6 : f32 to vector<8x1xf32>
    %9 = arith.divf %7, %8 : vector<8x1xf32>
    %10 = vector.broadcast %9 : vector<8x1xf32> to vector<8x32xf32>
    %11 = arith.subf %3, %10 : vector<8x32xf32>
    %12 = arith.mulf %11, %11 : vector<8x32xf32>
    %cst_7 = arith.constant dense<0.000000e+00> : vector<8xf32>
    %13 = vector.multi_reduction <add>, %12, %cst_7 [1] : vector<8x32xf32> to vector<8xf32>
    %14 = vector.shape_cast %13 : vector<8xf32> to vector<8x1xf32>
    %cst_8 = arith.constant 3.200000e+01 : f32
    %15 = vector.broadcast %cst_8 : f32 to vector<8x1xf32>
    %16 = arith.divf %14, %15 : vector<8x1xf32>
    %17 = vector.broadcast %9 : vector<8x1xf32> to vector<8x32xf32>
    %18 = arith.subf %3, %17 : vector<8x32xf32>
    %cst_9 = arith.constant 9.99999974E-6 : f32
    %19 = vector.broadcast %cst_9 : f32 to vector<8x1xf32>
    %20 = arith.addf %16, %19 : vector<8x1xf32>
    %21 = math.rsqrt %20 : vector<8x1xf32>
    %22 = vector.broadcast %21 : vector<8x1xf32> to vector<8x32xf32>
    %23 = arith.mulf %18, %22 : vector<8x32xf32>
    %24 = vector.broadcast %4 : vector<1x32xf32> to vector<8x32xf32>
    %25 = arith.mulf %24, %23 : vector<8x32xf32>
    %26 = vector.broadcast %5 : vector<1x32xf32> to vector<8x32xf32>
    %27 = arith.addf %25, %26 : vector<8x32xf32>
    %c0_10 = arith.constant 0 : index
    %c0_11 = arith.constant 0 : index
    %28 = vector.load %arg5[%c0_10, %c0_11] : memref<32x96xf32, #tpu.memory_space<vmem>>, vector<32x96xf32>
    %cst_12 = arith.constant dense<0.000000e+00> : vector<8x96xf32>
    %29 = tpu.matmul %27, %28, %cst_12 {dimension_numbers = #tpu.dot_dimension_numbers<[1], [0], [0], [1], [0, 0, 1, 1], [], []>} : vector<8x32xf32>, vector<32x96xf32>, vector<8x96xf32> -> vector<8x96xf32>
    %30 = vector.extract_strided_slice %29 {offsets = [0, 0], sizes = [8, 32], strides = [1, 1]} : vector<8x96xf32> to vector<8x32xf32>
    %cst_13 = arith.constant 0.353553385 : f32
    %31 = vector.broadcast %cst_13 : f32 to vector<8x32xf32>
    %32 = arith.mulf %30, %31 : vector<8x32xf32>
    %33 = vector.extract_strided_slice %29 {offsets = [0, 32], sizes = [8, 32], strides = [1, 1]} : vector<8x96xf32> to vector<8x32xf32>
    %34 = arith.index_cast %1 : i32 to index
    %c0_14 = arith.constant 0 : index
    %35 = vector.load %arg15[%34, %c0_14] : memref<8x32xf32, #tpu.memory_space<vmem>>, vector<8x32xf32>
    tpu.vector_store %arg15[%34, %c0_14], %33 {strides = array<i32>} : memref<8x32xf32, #tpu.memory_space<vmem>>, vector<8x32xf32>,
    %36 = vector.extract_strided_slice %29 {offsets = [0, 64], sizes = [8, 32], strides = [1, 1]} : vector<8x96xf32> to vector<8x32xf32>
    %37 = arith.index_cast %1 : i32 to index
    %c0_15 = arith.constant 0 : index
    %38 = vector.load %arg16[%37, %c0_15] : memref<8x32xf32, #tpu.memory_space<vmem>>, vector<8x32xf32>
    tpu.vector_store %arg16[%37, %c0_15], %36 {strides = array<i32>} : memref<8x32xf32, #tpu.memory_space<vmem>>, vector<8x32xf32>,
    %39 = tpu.iota {dimensions = array<i32: 0>} : vector<8x8xi32>
    %40 = tpu.iota {dimensions = array<i32: 1>} : vector<8x8xi32>
    %41 = arith.cmpi sgt, %40, %39 : vector<8x8xi32>
    %cst_16 = arith.constant -1.000000e+30 : f32
    %cst_17 = arith.constant 0.000000e+00 : f32
    %42 = vector.broadcast %cst_16 : f32 to vector<8x8xf32>
    %43 = vector.broadcast %cst_17 : f32 to vector<8x8xf32>
    %44 = arith.select %41, %42, %43 : vector<8x8xi1>, vector<8x8xf32>
    %45 = vector.extract_strided_slice %32 {offsets = [0, 0], sizes = [8, 8], strides = [1, 1]} : vector<8x32xf32> to vector<8x8xf32>
    %cst_18 = arith.constant -1.000000e+30 : f32
    %46 = vector.broadcast %cst_18 : f32 to vector<8x1xf32>
    %cst_19 = arith.constant 0.000000e+00 : f32
    %47 = vector.broadcast %cst_19 : f32 to vector<8x1xf32>
    %cst_20 = arith.constant 0.000000e+00 : f32
    %48 = vector.broadcast %cst_20 : f32 to vector<8x8xf32>
    %c1_i32 = arith.constant 1 : i32
    %49 = arith.addi %arg1, %c1_i32 : i32
    %c0_i32 = arith.constant 0 : i32
    %50 = arith.subi %49, %c0_i32 : i32
    %51 = arith.addi %c0_i32, %50 : i32
    %c1_i32_21 = arith.constant 1 : i32
    %52:3 = scf.for %arg18 = %c0_i32 to %51 step %c1_i32_21 iter_args(%arg19 = %46, %arg20 = %47, %arg21 = %48) -> (vector<8x1xf32>, vector<8x1xf32>, vector<8x8xf32>)  : i32 {
      %c8_i32_79 = arith.constant 8 : i32
      %145 = arith.muli %arg18, %c8_i32_79 : i32
      %146 = tpu.assume_multiple %145, 8 : i32
      %147 = arith.index_cast %146 : i32 to index
      %c0_80 = arith.constant 0 : index
      %148 = vector.load %arg15[%147, %c0_80] : memref<8x32xf32, #tpu.memory_space<vmem>>, vector<8x8xf32>
      %149 = arith.index_cast %146 : i32 to index
      %c0_81 = arith.constant 0 : index
      %150 = vector.load %arg16[%149, %c0_81] : memref<8x32xf32, #tpu.memory_space<vmem>>, vector<8x8xf32>
      %cst_82 = arith.constant dense<0.000000e+00> : vector<8x8xf32>
      %151 = tpu.matmul %45, %148, %cst_82 {dimension_numbers = #tpu.dot_dimension_numbers<[1], [1], [0], [0], [0, 0, 1, 0], [], []>} : vector<8x8xf32>, vector<8x8xf32>, vector<8x8xf32> -> vector<8x8xf32>
      %152 = arith.cmpi eq, %arg18, %arg1 : i32
      %153 = arith.addf %151, %44 : vector<8x8xf32>
      %154 = arith.select %152, %153, %151 : vector<8x8xf32>
      %cst_83 = arith.constant dense<0xFF800000> : vector<8xf32>
      %155 = vector.multi_reduction <maximumf>, %154, %cst_83 [1] : vector<8x8xf32> to vector<8xf32>
      %156 = vector.shape_cast %155 : vector<8xf32> to vector<8x1xf32>
      %157 = arith.maximumf %arg19, %156 : vector<8x1xf32>
      %158 = arith.subf %arg19, %157 : vector<8x1xf32>
      %159 = math.exp %158 : vector<8x1xf32>
      %160 = vector.broadcast %157 : vector<8x1xf32> to vector<8x8xf32>
      %161 = arith.subf %154, %160 : vector<8x8xf32>
      %162 = math.exp %161 : vector<8x8xf32>
      %163 = arith.mulf %159, %arg20 : vector<8x1xf32>
      %cst_84 = arith.constant dense<0.000000e+00> : vector<8xf32>
      %164 = vector.multi_reduction <add>, %162, %cst_84 [1] : vector<8x8xf32> to vector<8xf32>
      %165 = vector.shape_cast %164 : vector<8xf32> to vector<8x1xf32>
      %166 = arith.addf %163, %165 : vector<8x1xf32>
      %167 = vector.broadcast %159 : vector<8x1xf32> to vector<8x8xf32>
      %168 = arith.mulf %167, %arg21 : vector<8x8xf32>
      %cst_85 = arith.constant dense<0.000000e+00> : vector<8x8xf32>
      %169 = tpu.matmul %162, %150, %cst_85 {dimension_numbers = #tpu.dot_dimension_numbers<[1], [0], [0], [1], [0, 0, 1, 1], [], []>} : vector<8x8xf32>, vector<8x8xf32>, vector<8x8xf32> -> vector<8x8xf32>
      %170 = arith.addf %168, %169 : vector<8x8xf32>
      scf.yield %157, %166, %170 : vector<8x1xf32>, vector<8x1xf32>, vector<8x8xf32>
    }
    %cst_22 = arith.constant 1.000000e+00 : f32
    %53 = vector.broadcast %cst_22 : f32 to vector<8x1xf32>
    %54 = arith.divf %53, %52#1 : vector<8x1xf32>
    %55 = vector.broadcast %54 : vector<8x1xf32> to vector<8x8xf32>
    %56 = arith.mulf %52#2, %55 : vector<8x8xf32>
    %c0_23 = arith.constant 0 : index
    %c0_24 = arith.constant 0 : index
    %57 = vector.load %arg17[%c0_23, %c0_24] : memref<8x32xf32, #tpu.memory_space<vmem>>, vector<8x8xf32>
    tpu.vector_store %arg17[%c0_23, %c0_24], %56 {strides = array<i32>} : memref<8x32xf32, #tpu.memory_space<vmem>>, vector<8x8xf32>,
    %58 = vector.extract_strided_slice %32 {offsets = [0, 8], sizes = [8, 8], strides = [1, 1]} : vector<8x32xf32> to vector<8x8xf32>
    %cst_25 = arith.constant -1.000000e+30 : f32
    %59 = vector.broadcast %cst_25 : f32 to vector<8x1xf32>
    %cst_26 = arith.constant 0.000000e+00 : f32
    %60 = vector.broadcast %cst_26 : f32 to vector<8x1xf32>
    %cst_27 = arith.constant 0.000000e+00 : f32
    %61 = vector.broadcast %cst_27 : f32 to vector<8x8xf32>
    %c1_i32_28 = arith.constant 1 : i32
    %62 = arith.addi %arg1, %c1_i32_28 : i32
    %c0_i32_29 = arith.constant 0 : i32
    %63 = arith.subi %62, %c0_i32_29 : i32
    %64 = arith.addi %c0_i32_29, %63 : i32
    %c1_i32_30 = arith.constant 1 : i32
    %65:3 = scf.for %arg18 = %c0_i32_29 to %64 step %c1_i32_30 iter_args(%arg19 = %59, %arg20 = %60, %arg21 = %61) -> (vector<8x1xf32>, vector<8x1xf32>, vector<8x8xf32>)  : i32 {
      %c8_i32_79 = arith.constant 8 : i32
      %145 = arith.muli %arg18, %c8_i32_79 : i32
      %146 = tpu.assume_multiple %145, 8 : i32
      %147 = arith.index_cast %146 : i32 to index
      %c8_80 = arith.constant 8 : index
      %148 = vector.load %arg15[%147, %c8_80] : memref<8x32xf32, #tpu.memory_space<vmem>>, vector<8x8xf32>
      %149 = arith.index_cast %146 : i32 to index
      %c8_81 = arith.constant 8 : index
      %150 = vector.load %arg16[%149, %c8_81] : memref<8x32xf32, #tpu.memory_space<vmem>>, vector<8x8xf32>
      %cst_82 = arith.constant dense<0.000000e+00> : vector<8x8xf32>
      %151 = tpu.matmul %58, %148, %cst_82 {dimension_numbers = #tpu.dot_dimension_numbers<[1], [1], [0], [0], [0, 0, 1, 0], [], []>} : vector<8x8xf32>, vector<8x8xf32>, vector<8x8xf32> -> vector<8x8xf32>
      %152 = arith.cmpi eq, %arg18, %arg1 : i32
      %153 = arith.addf %151, %44 : vector<8x8xf32>
      %154 = arith.select %152, %153, %151 : vector<8x8xf32>
      %cst_83 = arith.constant dense<0xFF800000> : vector<8xf32>
      %155 = vector.multi_reduction <maximumf>, %154, %cst_83 [1] : vector<8x8xf32> to vector<8xf32>
      %156 = vector.shape_cast %155 : vector<8xf32> to vector<8x1xf32>
      %157 = arith.maximumf %arg19, %156 : vector<8x1xf32>
      %158 = arith.subf %arg19, %157 : vector<8x1xf32>
      %159 = math.exp %158 : vector<8x1xf32>
      %160 = vector.broadcast %157 : vector<8x1xf32> to vector<8x8xf32>
      %161 = arith.subf %154, %160 : vector<8x8xf32>
      %162 = math.exp %161 : vector<8x8xf32>
      %163 = arith.mulf %159, %arg20 : vector<8x1xf32>
      %cst_84 = arith.constant dense<0.000000e+00> : vector<8xf32>
      %164 = vector.multi_reduction <add>, %162, %cst_84 [1] : vector<8x8xf32> to vector<8xf32>
      %165 = vector.shape_cast %164 : vector<8xf32> to vector<8x1xf32>
      %166 = arith.addf %163, %165 : vector<8x1xf32>
      %167 = vector.broadcast %159 : vector<8x1xf32> to vector<8x8xf32>
      %168 = arith.mulf %167, %arg21 : vector<8x8xf32>
      %cst_85 = arith.constant dense<0.000000e+00> : vector<8x8xf32>
      %169 = tpu.matmul %162, %150, %cst_85 {dimension_numbers = #tpu.dot_dimension_numbers<[1], [0], [0], [1], [0, 0, 1, 1], [], []>} : vector<8x8xf32>, vector<8x8xf32>, vector<8x8xf32> -> vector<8x8xf32>
      %170 = arith.addf %168, %169 : vector<8x8xf32>
      scf.yield %157, %166, %170 : vector<8x1xf32>, vector<8x1xf32>, vector<8x8xf32>
    }
    %cst_31 = arith.constant 1.000000e+00 : f32
    %66 = vector.broadcast %cst_31 : f32 to vector<8x1xf32>
    %67 = arith.divf %66, %65#1 : vector<8x1xf32>
    %68 = vector.broadcast %67 : vector<8x1xf32> to vector<8x8xf32>
    %69 = arith.mulf %65#2, %68 : vector<8x8xf32>
    %c0_32 = arith.constant 0 : index
    %c8 = arith.constant 8 : index
    %70 = vector.load %arg17[%c0_32, %c8] : memref<8x32xf32, #tpu.memory_space<vmem>>, vector<8x8xf32>
    tpu.vector_store %arg17[%c0_32, %c8], %69 {strides = array<i32>} : memref<8x32xf32, #tpu.memory_space<vmem>>, vector<8x8xf32>,
    %71 = vector.extract_strided_slice %32 {offsets = [0, 16], sizes = [8, 8], strides = [1, 1]} : vector<8x32xf32> to vector<8x8xf32>
    %cst_33 = arith.constant -1.000000e+30 : f32
    %72 = vector.broadcast %cst_33 : f32 to vector<8x1xf32>
    %cst_34 = arith.constant 0.000000e+00 : f32
    %73 = vector.broadcast %cst_34 : f32 to vector<8x1xf32>
    %cst_35 = arith.constant 0.000000e+00 : f32
    %74 = vector.broadcast %cst_35 : f32 to vector<8x8xf32>
    %c1_i32_36 = arith.constant 1 : i32
    %75 = arith.addi %arg1, %c1_i32_36 : i32
    %c0_i32_37 = arith.constant 0 : i32
    %76 = arith.subi %75, %c0_i32_37 : i32
    %77 = arith.addi %c0_i32_37, %76 : i32
    %c1_i32_38 = arith.constant 1 : i32
    %78:3 = scf.for %arg18 = %c0_i32_37 to %77 step %c1_i32_38 iter_args(%arg19 = %72, %arg20 = %73, %arg21 = %74) -> (vector<8x1xf32>, vector<8x1xf32>, vector<8x8xf32>)  : i32 {
      %c8_i32_79 = arith.constant 8 : i32
      %145 = arith.muli %arg18, %c8_i32_79 : i32
      %146 = tpu.assume_multiple %145, 8 : i32
      %147 = arith.index_cast %146 : i32 to index
      %c16_80 = arith.constant 16 : index
      %148 = vector.load %arg15[%147, %c16_80] : memref<8x32xf32, #tpu.memory_space<vmem>>, vector<8x8xf32>
      %149 = arith.index_cast %146 : i32 to index
      %c16_81 = arith.constant 16 : index
      %150 = vector.load %arg16[%149, %c16_81] : memref<8x32xf32, #tpu.memory_space<vmem>>, vector<8x8xf32>
      %cst_82 = arith.constant dense<0.000000e+00> : vector<8x8xf32>
      %151 = tpu.matmul %71, %148, %cst_82 {dimension_numbers = #tpu.dot_dimension_numbers<[1], [1], [0], [0], [0, 0, 1, 0], [], []>} : vector<8x8xf32>, vector<8x8xf32>, vector<8x8xf32> -> vector<8x8xf32>
      %152 = arith.cmpi eq, %arg18, %arg1 : i32
      %153 = arith.addf %151, %44 : vector<8x8xf32>
      %154 = arith.select %152, %153, %151 : vector<8x8xf32>
      %cst_83 = arith.constant dense<0xFF800000> : vector<8xf32>
      %155 = vector.multi_reduction <maximumf>, %154, %cst_83 [1] : vector<8x8xf32> to vector<8xf32>
      %156 = vector.shape_cast %155 : vector<8xf32> to vector<8x1xf32>
      %157 = arith.maximumf %arg19, %156 : vector<8x1xf32>
      %158 = arith.subf %arg19, %157 : vector<8x1xf32>
      %159 = math.exp %158 : vector<8x1xf32>
      %160 = vector.broadcast %157 : vector<8x1xf32> to vector<8x8xf32>
      %161 = arith.subf %154, %160 : vector<8x8xf32>
      %162 = math.exp %161 : vector<8x8xf32>
      %163 = arith.mulf %159, %arg20 : vector<8x1xf32>
      %cst_84 = arith.constant dense<0.000000e+00> : vector<8xf32>
      %164 = vector.multi_reduction <add>, %162, %cst_84 [1] : vector<8x8xf32> to vector<8xf32>
      %165 = vector.shape_cast %164 : vector<8xf32> to vector<8x1xf32>
      %166 = arith.addf %163, %165 : vector<8x1xf32>
      %167 = vector.broadcast %159 : vector<8x1xf32> to vector<8x8xf32>
      %168 = arith.mulf %167, %arg21 : vector<8x8xf32>
      %cst_85 = arith.constant dense<0.000000e+00> : vector<8x8xf32>
      %169 = tpu.matmul %162, %150, %cst_85 {dimension_numbers = #tpu.dot_dimension_numbers<[1], [0], [0], [1], [0, 0, 1, 1], [], []>} : vector<8x8xf32>, vector<8x8xf32>, vector<8x8xf32> -> vector<8x8xf32>
      %170 = arith.addf %168, %169 : vector<8x8xf32>
      scf.yield %157, %166, %170 : vector<8x1xf32>, vector<8x1xf32>, vector<8x8xf32>
    }
    %cst_39 = arith.constant 1.000000e+00 : f32
    %79 = vector.broadcast %cst_39 : f32 to vector<8x1xf32>
    %80 = arith.divf %79, %78#1 : vector<8x1xf32>
    %81 = vector.broadcast %80 : vector<8x1xf32> to vector<8x8xf32>
    %82 = arith.mulf %78#2, %81 : vector<8x8xf32>
    %c0_40 = arith.constant 0 : index
    %c16 = arith.constant 16 : index
    %83 = vector.load %arg17[%c0_40, %c16] : memref<8x32xf32, #tpu.memory_space<vmem>>, vector<8x8xf32>
    tpu.vector_store %arg17[%c0_40, %c16], %82 {strides = array<i32>} : memref<8x32xf32, #tpu.memory_space<vmem>>, vector<8x8xf32>,
    %84 = vector.extract_strided_slice %32 {offsets = [0, 24], sizes = [8, 8], strides = [1, 1]} : vector<8x32xf32> to vector<8x8xf32>
    %cst_41 = arith.constant -1.000000e+30 : f32
    %85 = vector.broadcast %cst_41 : f32 to vector<8x1xf32>
    %cst_42 = arith.constant 0.000000e+00 : f32
    %86 = vector.broadcast %cst_42 : f32 to vector<8x1xf32>
    %cst_43 = arith.constant 0.000000e+00 : f32
    %87 = vector.broadcast %cst_43 : f32 to vector<8x8xf32>
    %c1_i32_44 = arith.constant 1 : i32
    %88 = arith.addi %arg1, %c1_i32_44 : i32
    %c0_i32_45 = arith.constant 0 : i32
    %89 = arith.subi %88, %c0_i32_45 : i32
    %90 = arith.addi %c0_i32_45, %89 : i32
    %c1_i32_46 = arith.constant 1 : i32
    %91:3 = scf.for %arg18 = %c0_i32_45 to %90 step %c1_i32_46 iter_args(%arg19 = %85, %arg20 = %86, %arg21 = %87) -> (vector<8x1xf32>, vector<8x1xf32>, vector<8x8xf32>)  : i32 {
      %c8_i32_79 = arith.constant 8 : i32
      %145 = arith.muli %arg18, %c8_i32_79 : i32
      %146 = tpu.assume_multiple %145, 8 : i32
      %147 = arith.index_cast %146 : i32 to index
      %c24_80 = arith.constant 24 : index
      %148 = vector.load %arg15[%147, %c24_80] : memref<8x32xf32, #tpu.memory_space<vmem>>, vector<8x8xf32>
      %149 = arith.index_cast %146 : i32 to index
      %c24_81 = arith.constant 24 : index
      %150 = vector.load %arg16[%149, %c24_81] : memref<8x32xf32, #tpu.memory_space<vmem>>, vector<8x8xf32>
      %cst_82 = arith.constant dense<0.000000e+00> : vector<8x8xf32>
      %151 = tpu.matmul %84, %148, %cst_82 {dimension_numbers = #tpu.dot_dimension_numbers<[1], [1], [0], [0], [0, 0, 1, 0], [], []>} : vector<8x8xf32>, vector<8x8xf32>, vector<8x8xf32> -> vector<8x8xf32>
      %152 = arith.cmpi eq, %arg18, %arg1 : i32
      %153 = arith.addf %151, %44 : vector<8x8xf32>
      %154 = arith.select %152, %153, %151 : vector<8x8xf32>
      %cst_83 = arith.constant dense<0xFF800000> : vector<8xf32>
      %155 = vector.multi_reduction <maximumf>, %154, %cst_83 [1] : vector<8x8xf32> to vector<8xf32>
      %156 = vector.shape_cast %155 : vector<8xf32> to vector<8x1xf32>
      %157 = arith.maximumf %arg19, %156 : vector<8x1xf32>
      %158 = arith.subf %arg19, %157 : vector<8x1xf32>
      %159 = math.exp %158 : vector<8x1xf32>
      %160 = vector.broadcast %157 : vector<8x1xf32> to vector<8x8xf32>
      %161 = arith.subf %154, %160 : vector<8x8xf32>
      %162 = math.exp %161 : vector<8x8xf32>
      %163 = arith.mulf %159, %arg20 : vector<8x1xf32>
      %cst_84 = arith.constant dense<0.000000e+00> : vector<8xf32>
      %164 = vector.multi_reduction <add>, %162, %cst_84 [1] : vector<8x8xf32> to vector<8xf32>
      %165 = vector.shape_cast %164 : vector<8xf32> to vector<8x1xf32>
      %166 = arith.addf %163, %165 : vector<8x1xf32>
      %167 = vector.broadcast %159 : vector<8x1xf32> to vector<8x8xf32>
      %168 = arith.mulf %167, %arg21 : vector<8x8xf32>
      %cst_85 = arith.constant dense<0.000000e+00> : vector<8x8xf32>
      %169 = tpu.matmul %162, %150, %cst_85 {dimension_numbers = #tpu.dot_dimension_numbers<[1], [0], [0], [1], [0, 0, 1, 1], [], []>} : vector<8x8xf32>, vector<8x8xf32>, vector<8x8xf32> -> vector<8x8xf32>
      %170 = arith.addf %168, %169 : vector<8x8xf32>
      scf.yield %157, %166, %170 : vector<8x1xf32>, vector<8x1xf32>, vector<8x8xf32>
    }
    %cst_47 = arith.constant 1.000000e+00 : f32
    %92 = vector.broadcast %cst_47 : f32 to vector<8x1xf32>
    %93 = arith.divf %92, %91#1 : vector<8x1xf32>
    %94 = vector.broadcast %93 : vector<8x1xf32> to vector<8x8xf32>
    %95 = arith.mulf %91#2, %94 : vector<8x8xf32>
    %c0_48 = arith.constant 0 : index
    %c24 = arith.constant 24 : index
    %96 = vector.load %arg17[%c0_48, %c24] : memref<8x32xf32, #tpu.memory_space<vmem>>, vector<8x8xf32>
    tpu.vector_store %arg17[%c0_48, %c24], %95 {strides = array<i32>} : memref<8x32xf32, #tpu.memory_space<vmem>>, vector<8x8xf32>,
    %c0_49 = arith.constant 0 : index
    %c0_50 = arith.constant 0 : index
    %97 = vector.load %arg17[%c0_49, %c0_50] : memref<8x32xf32, #tpu.memory_space<vmem>>, vector<8x32xf32>
    %c0_51 = arith.constant 0 : index
    %c0_52 = arith.constant 0 : index
    %98 = vector.load %arg6[%c0_51, %c0_52] : memref<32x32xf32, #tpu.memory_space<vmem>>, vector<32x32xf32>
    %cst_53 = arith.constant dense<0.000000e+00> : vector<8x32xf32>
    %99 = tpu.matmul %97, %98, %cst_53 {dimension_numbers = #tpu.dot_dimension_numbers<[1], [0], [0], [1], [0, 0, 1, 1], [], []>} : vector<8x32xf32>, vector<32x32xf32>, vector<8x32xf32> -> vector<8x32xf32>
    %c0_54 = arith.constant 0 : index
    %c0_55 = arith.constant 0 : index
    %100 = vector.load %arg7[%c0_54, %c0_55] : memref<1x32xf32, #tpu.memory_space<vmem>>, vector<1x32xf32>
    %101 = vector.broadcast %100 : vector<1x32xf32> to vector<8x32xf32>
    %102 = arith.addf %99, %101 : vector<8x32xf32>
    %103 = arith.addf %102, %3 : vector<8x32xf32>
    %c0_56 = arith.constant 0 : index
    %c0_57 = arith.constant 0 : index
    %104 = vector.load %arg8[%c0_56, %c0_57] : memref<1x32xf32, #tpu.memory_space<vmem>>, vector<1x32xf32>
    %c0_58 = arith.constant 0 : index
    %c0_59 = arith.constant 0 : index
    %105 = vector.load %arg9[%c0_58, %c0_59] : memref<1x32xf32, #tpu.memory_space<vmem>>, vector<1x32xf32>
    %cst_60 = arith.constant dense<0.000000e+00> : vector<8xf32>
    %106 = vector.multi_reduction <add>, %103, %cst_60 [1] : vector<8x32xf32> to vector<8xf32>
    %107 = vector.shape_cast %106 : vector<8xf32> to vector<8x1xf32>
    %cst_61 = arith.constant 3.200000e+01 : f32
    %108 = vector.broadcast %cst_61 : f32 to vector<8x1xf32>
    %109 = arith.divf %107, %108 : vector<8x1xf32>
    %110 = vector.broadcast %109 : vector<8x1xf32> to vector<8x32xf32>
    %111 = arith.subf %103, %110 : vector<8x32xf32>
    %112 = arith.mulf %111, %111 : vector<8x32xf32>
    %cst_62 = arith.constant dense<0.000000e+00> : vector<8xf32>
    %113 = vector.multi_reduction <add>, %112, %cst_62 [1] : vector<8x32xf32> to vector<8xf32>
    %114 = vector.shape_cast %113 : vector<8xf32> to vector<8x1xf32>
    %cst_63 = arith.constant 3.200000e+01 : f32
    %115 = vector.broadcast %cst_63 : f32 to vector<8x1xf32>
    %116 = arith.divf %114, %115 : vector<8x1xf32>
    %117 = vector.broadcast %109 : vector<8x1xf32> to vector<8x32xf32>
    %118 = arith.subf %103, %117 : vector<8x32xf32>
    %cst_64 = arith.constant 9.99999974E-6 : f32
    %119 = vector.broadcast %cst_64 : f32 to vector<8x1xf32>
    %120 = arith.addf %116, %119 : vector<8x1xf32>
    %121 = math.rsqrt %120 : vector<8x1xf32>
    %122 = vector.broadcast %121 : vector<8x1xf32> to vector<8x32xf32>
    %123 = arith.mulf %118, %122 : vector<8x32xf32>
    %124 = vector.broadcast %104 : vector<1x32xf32> to vector<8x32xf32>
    %125 = arith.mulf %124, %123 : vector<8x32xf32>
    %126 = vector.broadcast %105 : vector<1x32xf32> to vector<8x32xf32>
    %127 = arith.addf %125, %126 : vector<8x32xf32>
    %c0_65 = arith.constant 0 : index
    %c0_66 = arith.constant 0 : index
    %128 = vector.load %arg10[%c0_65, %c0_66] : memref<32x128xf32, #tpu.memory_space<vmem>>, vector<32x128xf32>
    %cst_67 = arith.constant dense<0.000000e+00> : vector<8x128xf32>
    %129 = tpu.matmul %127, %128, %cst_67 {dimension_numbers = #tpu.dot_dimension_numbers<[1], [0], [0], [1], [0, 0, 1, 1], [], []>} : vector<8x32xf32>, vector<32x128xf32>, vector<8x128xf32> -> vector<8x128xf32>
    %c0_68 = arith.constant 0 : index
    %c0_69 = arith.constant 0 : index
    %130 = vector.load %arg11[%c0_68, %c0_69] : memref<1x128xf32, #tpu.memory_space<vmem>>, vector<1x128xf32>
    %131 = vector.broadcast %130 : vector<1x128xf32> to vector<8x128xf32>
    %132 = arith.addf %129, %131 : vector<8x128xf32>
    %133 = math.cos %132 : vector<8x128xf32>
    %cst_70 = arith.constant 1.250000e-01 : f32
    %134 = vector.broadcast %cst_70 : f32 to vector<8x128xf32>
    %135 = arith.mulf %134, %133 : vector<8x128xf32>
    %c0_71 = arith.constant 0 : index
    %c0_72 = arith.constant 0 : index
    %136 = vector.load %arg12[%c0_71, %c0_72] : memref<128x32xf32, #tpu.memory_space<vmem>>, vector<128x32xf32>
    %cst_73 = arith.constant dense<0.000000e+00> : vector<8x32xf32>
    %137 = tpu.matmul %135, %136, %cst_73 {dimension_numbers = #tpu.dot_dimension_numbers<[1], [0], [0], [1], [0, 0, 1, 1], [], []>} : vector<8x128xf32>, vector<128x32xf32>, vector<8x32xf32> -> vector<8x32xf32>
    %c0_74 = arith.constant 0 : index
    %c0_75 = arith.constant 0 : index
    %138 = vector.load %arg13[%c0_74, %c0_75] : memref<1x32xf32, #tpu.memory_space<vmem>>, vector<1x32xf32>
    %139 = vector.broadcast %138 : vector<1x32xf32> to vector<8x32xf32>
    %140 = arith.addf %137, %139 : vector<8x32xf32>
    %141 = arith.addf %140, %103 : vector<8x32xf32>
    %c0_76 = arith.constant 0 : index
    %c0_77 = arith.constant 0 : index
    %c0_78 = arith.constant 0 : index
    %142 = vector.load %arg14[%c0_76, %c0_77, %c0_78] : memref<1x8x32xf32, #tpu.memory_space<vmem>>, vector<1x8x32xf32>
    %143 = vector.shape_cast %142 : vector<1x8x32xf32> to vector<8x32xf32>
    %144 = vector.shape_cast %141 : vector<8x32xf32> to vector<1x8x32xf32>
    tpu.vector_store %arg14[%c0_76, %c0_77, %c0_78], %144 {strides = array<i32>} : memref<1x8x32xf32, #tpu.memory_space<vmem>>, vector<1x8x32xf32>,
    return
  }
  func.func @transform_0(%arg0: i32, %arg1: i32) -> (i32, i32, i32) {
    %c0_i32 = arith.constant 0 : i32
    %c0_i32_0 = arith.constant 0 : i32
    return %arg0, %arg1, %c0_i32 : i32, i32, i32
  }
  func.func @transform_1(%arg0: i32, %arg1: i32) -> (i32, i32) {
    %c0_i32 = arith.constant 0 : i32
    %c0_i32_0 = arith.constant 0 : i32
    %c0_i32_1 = arith.constant 0 : i32
    return %c0_i32, %c0_i32_0 : i32, i32
  }
  func.func @transform_2(%arg0: i32, %arg1: i32) -> (i32, i32) {
    %c0_i32 = arith.constant 0 : i32
    %c0_i32_0 = arith.constant 0 : i32
    %c0_i32_1 = arith.constant 0 : i32
    return %c0_i32, %c0_i32_0 : i32, i32
  }
  func.func @transform_3(%arg0: i32, %arg1: i32) -> (i32, i32) {
    %c0_i32 = arith.constant 0 : i32
    %c0_i32_0 = arith.constant 0 : i32
    %c0_i32_1 = arith.constant 0 : i32
    return %c0_i32, %c0_i32_0 : i32, i32
  }
  func.func @transform_4(%arg0: i32, %arg1: i32) -> (i32, i32) {
    %c0_i32 = arith.constant 0 : i32
    %c0_i32_0 = arith.constant 0 : i32
    %c0_i32_1 = arith.constant 0 : i32
    return %c0_i32, %c0_i32_0 : i32, i32
  }
  func.func @transform_5(%arg0: i32, %arg1: i32) -> (i32, i32) {
    %c0_i32 = arith.constant 0 : i32
    %c0_i32_0 = arith.constant 0 : i32
    %c0_i32_1 = arith.constant 0 : i32
    return %c0_i32, %c0_i32_0 : i32, i32
  }
  func.func @transform_6(%arg0: i32, %arg1: i32) -> (i32, i32) {
    %c0_i32 = arith.constant 0 : i32
    %c0_i32_0 = arith.constant 0 : i32
    %c0_i32_1 = arith.constant 0 : i32
    return %c0_i32, %c0_i32_0 : i32, i32
  }
  func.func @transform_7(%arg0: i32, %arg1: i32) -> (i32, i32) {
    %c0_i32 = arith.constant 0 : i32
    %c0_i32_0 = arith.constant 0 : i32
    %c0_i32_1 = arith.constant 0 : i32
    return %c0_i32, %c0_i32_0 : i32, i32
  }
  func.func @transform_8(%arg0: i32, %arg1: i32) -> (i32, i32) {
    %c0_i32 = arith.constant 0 : i32
    %c0_i32_0 = arith.constant 0 : i32
    %c0_i32_1 = arith.constant 0 : i32
    return %c0_i32, %c0_i32_0 : i32, i32
  }
  func.func @transform_9(%arg0: i32, %arg1: i32) -> (i32, i32) {
    %c0_i32 = arith.constant 0 : i32
    %c0_i32_0 = arith.constant 0 : i32
    %c0_i32_1 = arith.constant 0 : i32
    return %c0_i32, %c0_i32_0 : i32, i32
  }
  func.func @transform_10(%arg0: i32, %arg1: i32) -> (i32, i32) {
    %c0_i32 = arith.constant 0 : i32
    %c0_i32_0 = arith.constant 0 : i32
    %c0_i32_1 = arith.constant 0 : i32
    return %c0_i32, %c0_i32_0 : i32, i32
  }
  func.func @transform_11(%arg0: i32, %arg1: i32) -> (i32, i32) {
    %c0_i32 = arith.constant 0 : i32
    %c0_i32_0 = arith.constant 0 : i32
    %c0_i32_1 = arith.constant 0 : i32
    return %c0_i32, %c0_i32_0 : i32, i32
  }
  func.func @transform_12(%arg0: i32, %arg1: i32) -> (i32, i32, i32) {
    %c0_i32 = arith.constant 0 : i32
    %c0_i32_0 = arith.constant 0 : i32
    return %arg0, %arg1, %c0_i32 : i32, i32, i32
  }
}

</mosaic_0001>

<llo_original>
// kernel: tpu_custom_call.1
$region0: #{tpu_custom_call.1}
  #allocation0 [shape = 'u32[]', space=smem, size = 0x4, offset = 0x4, fixed_abs, tag = 'smem constant byte address 0x4 - core index']
  #allocation1 [shape = 'u32[72,128]{1,0:T(1,128)}', space=vmem, size = 0x9000, scoped, tag = 'internal scratch']
  %s0 = inlined_call_operand.hbm [shape: f32[8,128], index: 0, kind: input, shape index: {}]
  %s1 = inlined_call_operand.hbm [shape: f32[8,128], index: 1, kind: output, shape index: {}]
  %s2 = sld [smem:[#allocation0]]
  $region41: #{tpu_custom_call.1} parent=0
    _
  %s4 = ssub.s32 1, %s2
  %s5 = scalar_select 0, %s4, %s2
  $region1: #{tpu_custom_call.1} parent=0
    #allocation2 [shape = 'u8[4096]{0}', space=vmem, size = 0x1000, scoped, tag = 'input window, operand 0, single buffered']
    #allocation3 [shape = 's32[2]{0}', space=sflag, size = 0x8, scoped, tag = 'scoped memory for tpu_custom_call.1']
    #allocation4 [shape = 's32[2]{0}', space=sflag, size = 0x8, scoped, tag = 'scoped memory for tpu_custom_call.1']
    #allocation5 [shape = 'u8[4096]{0}', space=vmem, size = 0x1000, scoped, tag = 'output window, operand 0, single buffered']
    %6 = vsyncpa [#allocation3], 0
    %7 = vsyncpa [#allocation4], 0
    loop: start=0, step=1, limit=4
    $region2: #{tpu_custom_call.1} parent=1 // loop_pre_header
      _
    $region3: #{tpu_custom_call.1} parent=1 // loop_header
      %s9 = sphi 0, %s13
      %p10 = scmp.ge.s32.totalorder %s9, 4
      %s17 = sphi 0, %s17
      %s19 = sphi 0, %s17
      %s20 = sphi 0, %s19
      %s34 = sphi 0, %s20
      %s38 = sphi 0, %s38
      %s40 = sphi 0, %s38
      %s41 = sphi 0, %s40
      %s55 = sphi 0, %s41
    $region4: #{tpu_custom_call.1} parent=1 // loop_header_branch
      %12 = sbr.rel (%p10) target = $region8
    $region5: #{tpu_custom_call.1} parent=1 // loop_body
      %s14 = ssub.s32 %s9, 1
      %s15 = ssub.s32 %s9, 2
      %s16 = sadd.s32 %s9, 1
      %s18 = sadd.s32 %s17, 1
      %p21 = scmp.eq.s32.totalorder %s9, 1
      %p22 = scmp.ne.s32.totalorder %s17, %s19
      %p23 = scmp.eq.s32.totalorder %s9, 0
      %p24 = por %p22, %p23
      %p25 = scmp.ne.s32.totalorder %s17, %s19
      %p26 = scmp.eq.s32.totalorder %s14, 1
      %p27 = por %p25, %p26
      %p28 = scmp.ne.s32.totalorder %s19, %s20
      %p29 = scmp.eq.s32.totalorder %s14, 0
      %p30 = por %p28, %p29
      %p31 = scmp.ne.s32.totalorder %s19, %s20
      %p32 = scmp.eq.s32.totalorder %s15, 1
      %p33 = por %p31, %p32
      %p35 = scmp.ne.s32.totalorder %s20, %s34
      %p36 = scmp.eq.s32.totalorder %s15, 0
      %p37 = por %p35, %p36
      %s39 = sadd.s32 %s38, 1
      %p42 = scmp.eq.s32.totalorder %s9, 1
      %p43 = scmp.ne.s32.totalorder %s38, %s40
      %p44 = scmp.eq.s32.totalorder %s9, 0
      %p45 = por %p43, %p44
      %p46 = scmp.ne.s32.totalorder %s38, %s40
      %p47 = scmp.eq.s32.totalorder %s14, 1
      %p48 = por %p46, %p47
      %p49 = scmp.ne.s32.totalorder %s40, %s41
      %p50 = scmp.eq.s32.totalorder %s14, 0
      %p51 = por %p49, %p50
      %p52 = scmp.ne.s32.totalorder %s40, %s41
      %p53 = scmp.eq.s32.totalorder %s15, 1
      %p54 = por %p52, %p53
      %p56 = scmp.ne.s32.totalorder %s41, %s55
      %p57 = scmp.eq.s32.totalorder %s15, 0
      %p58 = por %p56, %p57
      %p59 = scmp.le.s32.totalorder 1, %s9
      %p60 = scmp.lt.s32.totalorder %s9, 3
      %p61 = pnand %p59, %p60
      %p62 = pneg %p61
      // Predicated region
      $region9: #{tpu_custom_call.1} parent=5 // pred_check
        _
      $region10: #{tpu_custom_call.1} parent=5 // pred_check_branch
        %64 = sbr.rel (%p61) target = $region12
      $region11: #{tpu_custom_call.1} parent=5 // pred_region
        %s65 = ssub.s32 %s9, 1
        // Predicated region
        $region13: #{tpu_custom_call.1} parent=11 // pred_check
          %p66 = pneg %p30
        $region14: #{tpu_custom_call.1} parent=11 // pred_check_branch
          %68 = sbr.rel (%p66) target = $region16
        $region15: #{tpu_custom_call.1} parent=11 // pred_region
          %70 = vsyncadd [#allocation3], 0
          %s72 = sshll.u32 %s0, 4
          %s73 = int_to_ptr.hbm [resolvable:$true] %s72
          %s74 = sshll.u32 [#allocation2], 4
          %s75 = int_to_ptr.vmem [resolvable:$true] %s74
          %77 = dma.hbm_to_vmem [thread:$0]  %s73, 128, %s75, [#allocation3]
        $region16: #{tpu_custom_call.1} parent=11 // pred_fallthru
          _
      $region12: #{tpu_custom_call.1} parent=5 // pred_fallthru
        _
      %p78 = scmp.lt.s32.totalorder %s9, 2
      // Predicated region
      $region17: #{tpu_custom_call.1} parent=5 // pred_check
        %p79 = pneg %p78
      $region18: #{tpu_custom_call.1} parent=5 // pred_check_branch
        %81 = sbr.rel (%p79) target = $region20
      $region19: #{tpu_custom_call.1} parent=5 // pred_region
        _
      $region20: #{tpu_custom_call.1} parent=5 // pred_fallthru
        _
      %p82 = scmp.le.s32.totalorder 1, %s9
      %p83 = scmp.lt.s32.totalorder %s9, 3
      %p84 = pnand %p82, %p83
      %p85 = pneg %p84
      // Predicated region
      $region21: #{tpu_custom_call.1} parent=5 // pred_check
        _
      $region22: #{tpu_custom_call.1} parent=5 // pred_check_branch
        %87 = sbr.rel (%p84) target = $region24
      $region23: #{tpu_custom_call.1} parent=5 // pred_region
        %s88 = ssub.s32 %s9, 1
        // Predicated region
        $region25: #{tpu_custom_call.1} parent=23 // pred_check
          %p89 = pneg %p30
        $region26: #{tpu_custom_call.1} parent=23 // pred_check_branch
          %91 = sbr.rel (%p89) target = $region28
        $region27: #{tpu_custom_call.1} parent=23 // pred_region
          %93 = dma.done [#allocation3], 128
        $region28: #{tpu_custom_call.1} parent=23 // pred_fallthru
          _
        %p94 = pneg %p30
        %p95 = pneg %p27
        %p96 = pneg %p51
        %p97 = pneg %p48
        %v98 = vld [vmem:[#allocation2] sm:$0xff]
        %99 = vst [vmem:[#allocation5] sm:$0xff] %v98
        // Predicated region
        $region29: #{tpu_custom_call.1} parent=23 // pred_check
          %p100 = pneg %p48
        $region30: #{tpu_custom_call.1} parent=23 // pred_check_branch
          %102 = sbr.rel (%p100) target = $region32
        $region31: #{tpu_custom_call.1} parent=23 // pred_region
          %104 = vsyncadd [#allocation4], 0
          %s106 = sshll.u32 [#allocation5], 4
          %s107 = int_to_ptr.vmem [resolvable:$true] %s106
          %s108 = sshll.u32 %s1, 4
          %s109 = int_to_ptr.hbm [resolvable:$true] %s108
          %111 = dma.vmem_to_hbm [thread:$0]  %s107, 128, %s109, [#allocation4]
        $region32: #{tpu_custom_call.1} parent=23 // pred_fallthru
          _
        // Predicated region
        $region33: #{tpu_custom_call.1} parent=23 // pred_check
          %p112 = pneg %p48
        $region34: #{tpu_custom_call.1} parent=23 // pred_check_branch
          %114 = sbr.rel (%p112) target = $region36
        $region35: #{tpu_custom_call.1} parent=23 // pred_region
          %116 = dma.done [#allocation4], 128
        $region36: #{tpu_custom_call.1} parent=23 // pred_fallthru
          _
      $region24: #{tpu_custom_call.1} parent=5 // pred_fallthru
        _
      %p117 = scmp.le.s32.totalorder 2, %s9
      // Predicated region
      $region37: #{tpu_custom_call.1} parent=5 // pred_check
        %p118 = pneg %p117
      $region38: #{tpu_custom_call.1} parent=5 // pred_check_branch
        %120 = sbr.rel (%p118) target = $region40
      $region39: #{tpu_custom_call.1} parent=5 // pred_region
        %s121 = ssub.s32 %s9, 2
      $region40: #{tpu_custom_call.1} parent=5 // pred_fallthru
        _
    $region6: #{tpu_custom_call.1} parent=1 // loop_footer
      %s13 = sadd.s32 1, %s9
    $region7: #{tpu_custom_call.1} parent=1 // loop_footer_branch
      %8 = sbr.rel target = $region3
    $region8: #{tpu_custom_call.1} parent=1 // loop_exit
      _
    %122 = vsyncpa [#allocation3], 1
    %s123 = scalar_lea.sflag [#allocation3], 1
    %124 = vsyncpa %s123, 1
    %125 = vsyncpa [#allocation4], 1
    %s126 = scalar_lea.sflag [#allocation4], 1
    %127 = vsyncpa %s126, 1

// kernel: _transformer_block_rff_impl.1
$region0: #{_transformer_block_rff_impl.1}
  #allocation0 [shape = 'u32[]', space=smem, size = 0x4, offset = 0x4, fixed_abs, tag = 'smem constant byte address 0x4 - core index']
  #allocation1 [shape = 'u32[72,128]{1,0:T(1,128)}', space=vmem, size = 0x9000, scoped, tag = 'internal scratch']
  #allocation2 [shape = 'f32[8,32]{1,0:T(8,128)}', space=vmem, size = 0x1000, scoped, tag = 'scratch operand']
  #allocation3 [shape = 'f32[8,32]{1,0:T(8,128)}', space=vmem, size = 0x1000, scoped, tag = 'scratch operand']
  #allocation4 [shape = 'f32[8,32]{1,0:T(8,128)}', space=vmem, size = 0x1000, scoped, tag = 'scratch operand']
  %s0 = inlined_call_operand.vmem [shape: f32[2,8,32], index: 0, kind: input, shape index: {}]
  %s1 = inlined_call_operand.vmem [shape: f32[1,32], index: 1, kind: input, shape index: {}]
  %s2 = inlined_call_operand.vmem [shape: f32[1,32], index: 2, kind: input, shape index: {}]
  %s3 = inlined_call_operand.vmem [shape: f32[32,96], index: 3, kind: input, shape index: {}]
  %s4 = inlined_call_operand.vmem [shape: f32[32,32], index: 4, kind: input, shape index: {}]
  %s5 = inlined_call_operand.vmem [shape: f32[1,32], index: 5, kind: input, shape index: {}]
  %s6 = inlined_call_operand.vmem [shape: f32[1,32], index: 6, kind: input, shape index: {}]
  %s7 = inlined_call_operand.vmem [shape: f32[1,32], index: 7, kind: input, shape index: {}]
  %s8 = inlined_call_operand.vmem [shape: f32[32,128], index: 8, kind: input, shape index: {}]
  %s9 = inlined_call_operand.vmem [shape: f32[1,128], index: 9, kind: input, shape index: {}]
  %s10 = inlined_call_operand.vmem [shape: f32[128,32], index: 10, kind: input, shape index: {}]
  %s11 = inlined_call_operand.vmem [shape: f32[1,32], index: 11, kind: input, shape index: {}]
  %s12 = inlined_call_operand.hbm [shape: f32[2,8,32], index: 12, kind: output, shape index: {}]
  %s13 = sld [smem:[#allocation0]]
  $region109: #{_transformer_block_rff_impl.1} parent=0
    _
  %s15 = ssub.s32 1, %s13
  %s16 = scalar_select 0, %s15, %s13
  $region1: #{_transformer_block_rff_impl.1} parent=0
    #allocation5 [shape = 'u8[8192]{0}', space=vmem, size = 0x2000, scoped, tag = 'output window, operand 0']
    #allocation6 [shape = 's32[2]{0}', space=sflag, size = 0x8, scoped, tag = 'scoped memory for _transformer_block_rff_impl.1']
    %17 = vsyncpa [#allocation6], 0
    %s18 = scalar_lea.sflag [#allocation6], 1
    %19 = vsyncpa %s18, 0
    loop: start=0, step=1, limit=4
    $region2: #{_transformer_block_rff_impl.1} parent=1 // loop_pre_header
      _
    $region3: #{_transformer_block_rff_impl.1} parent=1 // loop_header
      %s21 = sphi 0, %s25
      %p22 = scmp.ge.s32.totalorder %s21, 4
      %s28 = sphi 0, %s40
      %s29 = sphi 0, %s36
      %s30 = sphi 0, %s28
      %s31 = sphi 0, %s29
      %s32 = sphi 0, %s30
      %s33 = sphi 0, %s31
      %s45 = sphi 0, %s47
      %s48 = sphi 0, %s45
      %s49 = sphi 0, %s48
      %s65 = sphi 0, %s49
      %s69 = sphi 0, %s69
      %s71 = sphi 0, %s69
      %s72 = sphi 0, %s71
      %s86 = sphi 0, %s72
      %s90 = sphi 0, %s90
      %s92 = sphi 0, %s90
      %s93 = sphi 0, %s92
      %s107 = sphi 0, %s93
      %s111 = sphi 0, %s111
      %s113 = sphi 0, %s111
      %s114 = sphi 0, %s113
      %s128 = sphi 0, %s114
      %s132 = sphi 0, %s132
      %s134 = sphi 0, %s132
      %s135 = sphi 0, %s134
      %s149 = sphi 0, %s135
      %s153 = sphi 0, %s153
      %s155 = sphi 0, %s153
      %s156 = sphi 0, %s155
      %s170 = sphi 0, %s156
      %s174 = sphi 0, %s174
      %s176 = sphi 0, %s174
      %s177 = sphi 0, %s176
      %s191 = sphi 0, %s177
      %s195 = sphi 0, %s195
      %s197 = sphi 0, %s195
      %s198 = sphi 0, %s197
      %s212 = sphi 0, %s198
      %s216 = sphi 0, %s216
      %s218 = sphi 0, %s216
      %s219 = sphi 0, %s218
      %s233 = sphi 0, %s219
      %s237 = sphi 0, %s237
      %s239 = sphi 0, %s237
      %s240 = sphi 0, %s239
      %s254 = sphi 0, %s240
      %s258 = sphi 0, %s258
      %s260 = sphi 0, %s258
      %s261 = sphi 0, %s260
      %s275 = sphi 0, %s261
      %s279 = sphi 0, %s279
      %s281 = sphi 0, %s279
      %s282 = sphi 0, %s281
      %s296 = sphi 0, %s282
      %s304 = sphi 0, %s306
      %s307 = sphi 0, %s304
      %s308 = sphi 0, %s307
      %s324 = sphi 0, %s308
    $region4: #{_transformer_block_rff_impl.1} parent=1 // loop_header_branch
      %24 = sbr.rel (%p22) target = $region8
    $region5: #{_transformer_block_rff_impl.1} parent=1 // loop_body
      %s26 = ssub.s32 %s21, 1
      %s27 = ssub.s32 %s21, 2
      %s34 = sadd.s32 1, %s29
      %p35 = scmp.ge.s32.totalorder %s34, 1
      %s36 = scalar_select %p35, 0, %s34
      %s37 = sadd.s32 1, %s28
      %s38 = scalar_select %p35, %s37, %s28
      %p39 = scmp.ge.s32.totalorder %s38, 2
      %s40 = scalar_select %p39, 0, %s38
      %s41 = ssub.s32 %s28, %s40
      %s42 = ssub.s32 %s29, %s36
      %s43 = sor.u32 %s41, %s42
      %p44 = scmp.eq.s32.totalorder %s43, 0
      %s46 = sadd.s32 %s45, 1
      %s47 = scalar_select %p44, %s45, %s46
      %p50 = pneg %p44
      %p51 = scmp.eq.s32.totalorder %s21, 1
      %p52 = por %p50, %p51
      %p53 = scmp.ne.s32.totalorder %s45, %s48
      %p54 = scmp.eq.s32.totalorder %s21, 0
      %p55 = por %p53, %p54
      %p56 = scmp.ne.s32.totalorder %s45, %s48
      %p57 = scmp.eq.s32.totalorder %s26, 1
      %p58 = por %p56, %p57
      %p59 = scmp.ne.s32.totalorder %s48, %s49
      %p60 = scmp.eq.s32.totalorder %s26, 0
      %p61 = por %p59, %p60
      %p62 = scmp.ne.s32.totalorder %s48, %s49
      %p63 = scmp.eq.s32.totalorder %s27, 1
      %p64 = por %p62, %p63
      %p66 = scmp.ne.s32.totalorder %s49, %s65
      %p67 = scmp.eq.s32.totalorder %s27, 0
      %p68 = por %p66, %p67
      %s70 = sadd.s32 %s69, 1
      %p73 = scmp.eq.s32.totalorder %s21, 1
      %p74 = scmp.ne.s32.totalorder %s69, %s71
      %p75 = scmp.eq.s32.totalorder %s21, 0
      %p76 = por %p74, %p75
      %p77 = scmp.ne.s32.totalorder %s69, %s71
      %p78 = scmp.eq.s32.totalorder %s26, 1
      %p79 = por %p77, %p78
      %p80 = scmp.ne.s32.totalorder %s71, %s72
      %p81 = scmp.eq.s32.totalorder %s26, 0
      %p82 = por %p80, %p81
      %p83 = scmp.ne.s32.totalorder %s71, %s72
      %p84 = scmp.eq.s32.totalorder %s27, 1
      %p85 = por %p83, %p84
      %p87 = scmp.ne.s32.totalorder %s72, %s86
      %p88 = scmp.eq.s32.totalorder %s27, 0
      %p89 = por %p87, %p88
      %s91 = sadd.s32 %s90, 1
      %p94 = scmp.eq.s32.totalorder %s21, 1
      %p95 = scmp.ne.s32.totalorder %s90, %s92
      %p96 = scmp.eq.s32.totalorder %s21, 0
      %p97 = por %p95, %p96
      %p98 = scmp.ne.s32.totalorder %s90, %s92
      %p99 = scmp.eq.s32.totalorder %s26, 1
      %p100 = por %p98, %p99
      %p101 = scmp.ne.s32.totalorder %s92, %s93
      %p102 = scmp.eq.s32.totalorder %s26, 0
      %p103 = por %p101, %p102
      %p104 = scmp.ne.s32.totalorder %s92, %s93
      %p105 = scmp.eq.s32.totalorder %s27, 1
      %p106 = por %p104, %p105
      %p108 = scmp.ne.s32.totalorder %s93, %s107
      %p109 = scmp.eq.s32.totalorder %s27, 0
      %p110 = por %p108, %p109
      %s112 = sadd.s32 %s111, 1
      %p115 = scmp.eq.s32.totalorder %s21, 1
      %p116 = scmp.ne.s32.totalorder %s111, %s113
      %p117 = scmp.eq.s32.totalorder %s21, 0
      %p118 = por %p116, %p117
      %p119 = scmp.ne.s32.totalorder %s111, %s113
      %p120 = scmp.eq.s32.totalorder %s26, 1
      %p121 = por %p119, %p120
      %p122 = scmp.ne.s32.totalorder %s113, %s114
      %p123 = scmp.eq.s32.totalorder %s26, 0
      %p124 = por %p122, %p123
      %p125 = scmp.ne.s32.totalorder %s113, %s114
      %p126 = scmp.eq.s32.totalorder %s27, 1
      %p127 = por %p125, %p126
      %p129 = scmp.ne.s32.totalorder %s114, %s128
      %p130 = scmp.eq.s32.totalorder %s27, 0
      %p131 = por %p129, %p130
      %s133 = sadd.s32 %s132, 1
      %p136 = scmp.eq.s32.totalorder %s21, 1
      %p137 = scmp.ne.s32.totalorder %s132, %s134
      %p138 = scmp.eq.s32.totalorder %s21, 0
      %p139 = por %p137, %p138
      %p140 = scmp.ne.s32.totalorder %s132, %s134
      %p141 = scmp.eq.s32.totalorder %s26, 1
      %p142 = por %p140, %p141
      %p143 = scmp.ne.s32.totalorder %s134, %s135
      %p144 = scmp.eq.s32.totalorder %s26, 0
      %p145 = por %p143, %p144
      %p146 = scmp.ne.s32.totalorder %s134, %s135
      %p147 = scmp.eq.s32.totalorder %s27, 1
      %p148 = por %p146, %p147
      %p150 = scmp.ne.s32.totalorder %s135, %s149
      %p151 = scmp.eq.s32.totalorder %s27, 0
      %p152 = por %p150, %p151
      %s154 = sadd.s32 %s153, 1
      %p157 = scmp.eq.s32.totalorder %s21, 1
      %p158 = scmp.ne.s32.totalorder %s153, %s155
      %p159 = scmp.eq.s32.totalorder %s21, 0
      %p160 = por %p158, %p159
      %p161 = scmp.ne.s32.totalorder %s153, %s155
      %p162 = scmp.eq.s32.totalorder %s26, 1
      %p163 = por %p161, %p162
      %p164 = scmp.ne.s32.totalorder %s155, %s156
      %p165 = scmp.eq.s32.totalorder %s26, 0
      %p166 = por %p164, %p165
      %p167 = scmp.ne.s32.totalorder %s155, %s156
      %p168 = scmp.eq.s32.totalorder %s27, 1
      %p169 = por %p167, %p168
      %p171 = scmp.ne.s32.totalorder %s156, %s170
      %p172 = scmp.eq.s32.totalorder %s27, 0
      %p173 = por %p171, %p172
      %s175 = sadd.s32 %s174, 1
      %p178 = scmp.eq.s32.totalorder %s21, 1
      %p179 = scmp.ne.s32.totalorder %s174, %s176
      %p180 = scmp.eq.s32.totalorder %s21, 0
      %p181 = por %p179, %p180
      %p182 = scmp.ne.s32.totalorder %s174, %s176
      %p183 = scmp.eq.s32.totalorder %s26, 1
      %p184 = por %p182, %p183
      %p185 = scmp.ne.s32.totalorder %s176, %s177
      %p186 = scmp.eq.s32.totalorder %s26, 0
      %p187 = por %p185, %p186
      %p188 = scmp.ne.s32.totalorder %s176, %s177
      %p189 = scmp.eq.s32.totalorder %s27, 1
      %p190 = por %p188, %p189
      %p192 = scmp.ne.s32.totalorder %s177, %s191
      %p193 = scmp.eq.s32.totalorder %s27, 0
      %p194 = por %p192, %p193
      %s196 = sadd.s32 %s195, 1
      %p199 = scmp.eq.s32.totalorder %s21, 1
      %p200 = scmp.ne.s32.totalorder %s195, %s197
      %p201 = scmp.eq.s32.totalorder %s21, 0
      %p202 = por %p200, %p201
      %p203 = scmp.ne.s32.totalorder %s195, %s197
      %p204 = scmp.eq.s32.totalorder %s26, 1
      %p205 = por %p203, %p204
      %p206 = scmp.ne.s32.totalorder %s197, %s198
      %p207 = scmp.eq.s32.totalorder %s26, 0
      %p208 = por %p206, %p207
      %p209 = scmp.ne.s32.totalorder %s197, %s198
      %p210 = scmp.eq.s32.totalorder %s27, 1
      %p211 = por %p209, %p210
      %p213 = scmp.ne.s32.totalorder %s198, %s212
      %p214 = scmp.eq.s32.totalorder %s27, 0
      %p215 = por %p213, %p214
      %s217 = sadd.s32 %s216, 1
      %p220 = scmp.eq.s32.totalorder %s21, 1
      %p221 = scmp.ne.s32.totalorder %s216, %s218
      %p222 = scmp.eq.s32.totalorder %s21, 0
      %p223 = por %p221, %p222
      %p224 = scmp.ne.s32.totalorder %s216, %s218
      %p225 = scmp.eq.s32.totalorder %s26, 1
      %p226 = por %p224, %p225
      %p227 = scmp.ne.s32.totalorder %s218, %s219
      %p228 = scmp.eq.s32.totalorder %s26, 0
      %p229 = por %p227, %p228
      %p230 = scmp.ne.s32.totalorder %s218, %s219
      %p231 = scmp.eq.s32.totalorder %s27, 1
      %p232 = por %p230, %p231
      %p234 = scmp.ne.s32.totalorder %s219, %s233
      %p235 = scmp.eq.s32.totalorder %s27, 0
      %p236 = por %p234, %p235
      %s238 = sadd.s32 %s237, 1
      %p241 = scmp.eq.s32.totalorder %s21, 1
      %p242 = scmp.ne.s32.totalorder %s237, %s239
      %p243 = scmp.eq.s32.totalorder %s21, 0
      %p244 = por %p242, %p243
      %p245 = scmp.ne.s32.totalorder %s237, %s239
      %p246 = scmp.eq.s32.totalorder %s26, 1
      %p247 = por %p245, %p246
      %p248 = scmp.ne.s32.totalorder %s239, %s240
      %p249 = scmp.eq.s32.totalorder %s26, 0
      %p250 = por %p248, %p249
      %p251 = scmp.ne.s32.totalorder %s239, %s240
      %p252 = scmp.eq.s32.totalorder %s27, 1
      %p253 = por %p251, %p252
      %p255 = scmp.ne.s32.totalorder %s240, %s254
      %p256 = scmp.eq.s32.totalorder %s27, 0
      %p257 = por %p255, %p256
      %s259 = sadd.s32 %s258, 1
      %p262 = scmp.eq.s32.totalorder %s21, 1
      %p263 = scmp.ne.s32.totalorder %s258, %s260
      %p264 = scmp.eq.s32.totalorder %s21, 0
      %p265 = por %p263, %p264
      %p266 = scmp.ne.s32.totalorder %s258, %s260
      %p267 = scmp.eq.s32.totalorder %s26, 1
      %p268 = por %p266, %p267
      %p269 = scmp.ne.s32.totalorder %s260, %s261
      %p270 = scmp.eq.s32.totalorder %s26, 0
      %p271 = por %p269, %p270
      %p272 = scmp.ne.s32.totalorder %s260, %s261
      %p273 = scmp.eq.s32.totalorder %s27, 1
      %p274 = por %p272, %p273
      %p276 = scmp.ne.s32.totalorder %s261, %s275
      %p277 = scmp.eq.s32.totalorder %s27, 0
      %p278 = por %p276, %p277
      %s280 = sadd.s32 %s279, 1
      %p283 = scmp.eq.s32.totalorder %s21, 1
      %p284 = scmp.ne.s32.totalorder %s279, %s281
      %p285 = scmp.eq.s32.totalorder %s21, 0
      %p286 = por %p284, %p285
      %p287 = scmp.ne.s32.totalorder %s279, %s281
      %p288 = scmp.eq.s32.totalorder %s26, 1
      %p289 = por %p287, %p288
      %p290 = scmp.ne.s32.totalorder %s281, %s282
      %p291 = scmp.eq.s32.totalorder %s26, 0
      %p292 = por %p290, %p291
      %p293 = scmp.ne.s32.totalorder %s281, %s282
      %p294 = scmp.eq.s32.totalorder %s27, 1
      %p295 = por %p293, %p294
      %p297 = scmp.ne.s32.totalorder %s282, %s296
      %p298 = scmp.eq.s32.totalorder %s27, 0
      %p299 = por %p297, %p298
      %s300 = ssub.s32 %s28, %s40
      %s301 = ssub.s32 %s29, %s36
      %s302 = sor.u32 %s300, %s301
      %p303 = scmp.eq.s32.totalorder %s302, 0
      %s305 = sadd.s32 %s304, 1
      %s306 = scalar_select %p303, %s304, %s305
      %p309 = pneg %p303
      %p310 = scmp.eq.s32.totalorder %s21, 1
      %p311 = por %p309, %p310
      %p312 = scmp.ne.s32.totalorder %s304, %s307
      %p313 = scmp.eq.s32.totalorder %s21, 0
      %p314 = por %p312, %p313
      %p315 = scmp.ne.s32.totalorder %s304, %s307
      %p316 = scmp.eq.s32.totalorder %s26, 1
      %p317 = por %p315, %p316
      %p318 = scmp.ne.s32.totalorder %s307, %s308
      %p319 = scmp.eq.s32.totalorder %s26, 0
      %p320 = por %p318, %p319
      %p321 = scmp.ne.s32.totalorder %s307, %s308
      %p322 = scmp.eq.s32.totalorder %s27, 1
      %p323 = por %p321, %p322
      %p325 = scmp.ne.s32.totalorder %s308, %s324
      %p326 = scmp.eq.s32.totalorder %s27, 0
      %p327 = por %p325, %p326
      %p328 = scmp.le.s32.totalorder 1, %s21
      %p329 = scmp.lt.s32.totalorder %s21, 3
      %p330 = pnand %p328, %p329
      %p331 = pneg %p330
      // Predicated region
      $region9: #{_transformer_block_rff_impl.1} parent=5 // pred_check
        _
      $region10: #{_transformer_block_rff_impl.1} parent=5 // pred_check_branch
        %333 = sbr.rel (%p330) target = $region12
      $region11: #{_transformer_block_rff_impl.1} parent=5 // pred_region
        %s334 = ssub.s32 %s21, 1
        // Predicated region
        $region13: #{_transformer_block_rff_impl.1} parent=11 // pred_check
          %p335 = pneg %p82
        $region14: #{_transformer_block_rff_impl.1} parent=11 // pred_check_branch
          %337 = sbr.rel (%p335) target = $region16
        $region15: #{_transformer_block_rff_impl.1} parent=11 // pred_region
          _
        $region16: #{_transformer_block_rff_impl.1} parent=11 // pred_fallthru
          _
        // Predicated region
        $region17: #{_transformer_block_rff_impl.1} parent=11 // pred_check
          %p338 = pneg %p103
        $region18: #{_transformer_block_rff_impl.1} parent=11 // pred_check_branch
          %340 = sbr.rel (%p338) target = $region20
        $region19: #{_transformer_block_rff_impl.1} parent=11 // pred_region
          _
        $region20: #{_transformer_block_rff_impl.1} parent=11 // pred_fallthru
          _
        // Predicated region
        $region21: #{_transformer_block_rff_impl.1} parent=11 // pred_check
          %p341 = pneg %p124
        $region22: #{_transformer_block_rff_impl.1} parent=11 // pred_check_branch
          %343 = sbr.rel (%p341) target = $region24
        $region23: #{_transformer_block_rff_impl.1} parent=11 // pred_region
          _
        $region24: #{_transformer_block_rff_impl.1} parent=11 // pred_fallthru
          _
        // Predicated region
        $region25: #{_transformer_block_rff_impl.1} parent=11 // pred_check
          %p344 = pneg %p145
        $region26: #{_transformer_block_rff_impl.1} parent=11 // pred_check_branch
          %346 = sbr.rel (%p344) target = $region28
        $region27: #{_transformer_block_rff_impl.1} parent=11 // pred_region
          _
        $region28: #{_transformer_block_rff_impl.1} parent=11 // pred_fallthru
          _
        // Predicated region
        $region29: #{_transformer_block_rff_impl.1} parent=11 // pred_check
          %p347 = pneg %p166
        $region30: #{_transformer_block_rff_impl.1} parent=11 // pred_check_branch
          %349 = sbr.rel (%p347) target = $region32
        $region31: #{_transformer_block_rff_impl.1} parent=11 // pred_region
          _
        $region32: #{_transformer_block_rff_impl.1} parent=11 // pred_fallthru
          _
        // Predicated region
        $region33: #{_transformer_block_rff_impl.1} parent=11 // pred_check
          %p350 = pneg %p187
        $region34: #{_transformer_block_rff_impl.1} parent=11 // pred_check_branch
          %352 = sbr.rel (%p350) target = $region36
        $region35: #{_transformer_block_rff_impl.1} parent=11 // pred_region
          _
        $region36: #{_transformer_block_rff_impl.1} parent=11 // pred_fallthru
          _
        // Predicated region
        $region37: #{_transformer_block_rff_impl.1} parent=11 // pred_check
          %p353 = pneg %p208
        $region38: #{_transformer_block_rff_impl.1} parent=11 // pred_check_branch
          %355 = sbr.rel (%p353) target = $region40
        $region39: #{_transformer_block_rff_impl.1} parent=11 // pred_region
          _
        $region40: #{_transformer_block_rff_impl.1} parent=11 // pred_fallthru
          _
        // Predicated region
        $region41: #{_transformer_block_rff_impl.1} parent=11 // pred_check
          %p356 = pneg %p229
        $region42: #{_transformer_block_rff_impl.1} parent=11 // pred_check_branch
          %358 = sbr.rel (%p356) target = $region44
        $region43: #{_transformer_block_rff_impl.1} parent=11 // pred_region
          _
        $region44: #{_transformer_block_rff_impl.1} parent=11 // pred_fallthru
          _
        // Predicated region
        $region45: #{_transformer_block_rff_impl.1} parent=11 // pred_check
          %p359 = pneg %p250
        $region46: #{_transformer_block_rff_impl.1} parent=11 // pred_check_branch
          %361 = sbr.rel (%p359) target = $region48
        $region47: #{_transformer_block_rff_impl.1} parent=11 // pred_region
          _
        $region48: #{_transformer_block_rff_impl.1} parent=11 // pred_fallthru
          _
        // Predicated region
        $region49: #{_transformer_block_rff_impl.1} parent=11 // pred_check
          %p362 = pneg %p271
        $region50: #{_transformer_block_rff_impl.1} parent=11 // pred_check_branch
          %364 = sbr.rel (%p362) target = $region52
        $region51: #{_transformer_block_rff_impl.1} parent=11 // pred_region
          _
        $region52: #{_transformer_block_rff_impl.1} parent=11 // pred_fallthru
          _
        // Predicated region
        $region53: #{_transformer_block_rff_impl.1} parent=11 // pred_check
          %p365 = pneg %p292
        $region54: #{_transformer_block_rff_impl.1} parent=11 // pred_check_branch
          %367 = sbr.rel (%p365) target = $region56
        $region55: #{_transformer_block_rff_impl.1} parent=11 // pred_region
          _
        $region56: #{_transformer_block_rff_impl.1} parent=11 // pred_fallthru
          _
      $region12: #{_transformer_block_rff_impl.1} parent=5 // pred_fallthru
        _
      %p368 = scmp.lt.s32.totalorder %s21, 2
      // Predicated region
      $region57: #{_transformer_block_rff_impl.1} parent=5 // pred_check
        %p369 = pneg %p368
      $region58: #{_transformer_block_rff_impl.1} parent=5 // pred_check_branch
        %371 = sbr.rel (%p369) target = $region60
      $region59: #{_transformer_block_rff_impl.1} parent=5 // pred_region
        // Predicated region
        $region61: #{_transformer_block_rff_impl.1} parent=59 // pred_check
          %p372 = pneg %p55
        $region62: #{_transformer_block_rff_impl.1} parent=59 // pred_check_branch
          %374 = sbr.rel (%p372) target = $region64
        $region63: #{_transformer_block_rff_impl.1} parent=59 // pred_region
          %p375 = scmp.lt.s32.totalorder %s28, 1
          %s376 = scalar_select %p375, %s28, 1
          %p377 = scmp.lt.s32.totalorder %s29, 0
          %s378 = scalar_select %p377, %s29, 0
          %s379 = sadd.s32 %s378, %s376
          %s380 = smul.addr %s379, 8
          %s381 = scalar_lea.vmem %s0, %s380
        $region64: #{_transformer_block_rff_impl.1} parent=59 // pred_fallthru
          _
      $region60: #{_transformer_block_rff_impl.1} parent=5 // pred_fallthru
        _
      %p382 = scmp.le.s32.totalorder 1, %s21
      %p383 = scmp.lt.s32.totalorder %s21, 3
      %p384 = pnand %p382, %p383
      %p385 = pneg %p384
      // Predicated region
      $region65: #{_transformer_block_rff_impl.1} parent=5 // pred_check
        _
      $region66: #{_transformer_block_rff_impl.1} parent=5 // pred_check_branch
        %387 = sbr.rel (%p384) target = $region68
      $region67: #{_transformer_block_rff_impl.1} parent=5 // pred_region
        %s388 = ssub.s32 %s21, 1
        %p389 = scmp.lt.s32.totalorder %s30, 1
        %s390 = scalar_select %p389, %s30, 1
        %p391 = scmp.lt.s32.totalorder %s31, 0
        %s392 = scalar_select %p391, %s31, 0
        %s393 = sadd.s32 %s392, %s390
        %s394 = smul.addr %s393, 8
        %s395 = scalar_lea.vmem %s0, %s394
        %p396 = pneg %p61
        %p397 = pneg %p58
        %p398 = pneg %p82
        %p399 = pneg %p79
        %p400 = pneg %p103
        %p401 = pneg %p100
        %p402 = pneg %p124
        %p403 = pneg %p121
        %p404 = pneg %p145
        %p405 = pneg %p142
        %p406 = pneg %p166
        %p407 = pneg %p163
        %p408 = pneg %p187
        %p409 = pneg %p184
        %p410 = pneg %p208
        %p411 = pneg %p205
        %p412 = pneg %p229
        %p413 = pneg %p226
        %p414 = pneg %p250
        %p415 = pneg %p247
        %p416 = pneg %p271
        %p417 = pneg %p268
        %p418 = pneg %p292
        %p419 = pneg %p289
        %p420 = pneg %p320
        %p421 = pneg %p317
        %s422 = sand.u32 %s307, 1
        %s423 = scalar_lea.sflag [#allocation6], %s422
        %s424 = sand.u32 %s307, 1
        %s425 = smul.addr %s424, 8
        %s426 = scalar_lea.vmem [#allocation5], %s425
        %p427 = scmp.lt.s32.totalorder %s30, 1
        %s428 = scalar_select %p427, %s30, 1
        %p429 = scmp.lt.s32.totalorder %s31, 0
        %s430 = scalar_select %p429, %s31, 0
        %s431 = sadd.s32 %s430, %s428
        %s432 = smul.addr %s431, 8
        %s433 = scalar_lea.vmem %s0, %s432
        %s434 = smul.u32 %s31, 8
        %v435 = vld [vmem:[%s433] sm:$0xff]
        %v436 = vld [vmem:[%s1] sm:$0x1]
        %v437 = vld [vmem:[%s2] sm:$0x1]
        %vm438 = vcmask 261120
        %v439 = vsel %vm438, %v435, 0.0
        %440 = vadd.xlane.f32.xlu0 %v439
        %v441 = vpop.xlane.xlu0 %440
        %v442 = vrcp.pop 32.0
        %v443 = vmul.f32 32.0, %v442
        %v444 = vsub.f32 1.0, %v443
        %v445 = vmul.f32 %v442, %v444
        %v446 = vadd.f32 %v442, %v445
        %vm447 = vweird.f32 %v442
        %v448 = vsel %vm447, %v442, %v446
        %v449 = vmul.f32 %v441, %v448
        %v450 = vsub.f32 %v435, %v449
        %v451 = vmul.f32 %v450, %v450
        %v452 = vsel %vm438, %v451, 0.0
        %453 = vadd.xlane.f32.xlu0 %v452
        %v454 = vpop.xlane.xlu0 %453
        %v455 = vmul.f32 %v454, %v448
        %v456 = vadd.f32 %v455, 1e-05
        %v457 = vrsqrt.pop %v456
        %v458 = vmul.f32 %v457, %v456
        %v459 = vmul.f32 %v458, %v457
        %v460 = vmul.f32 0.5, %v459
        %v461 = vsub.f32 1.5, %v460
        %v462 = vmul.f32 %v457, %v461
        %vm463 = vweird.f32 %v456
        %vm464 = vweird.f32 %v457
        %vm465 = vmor %vm463, %vm464
        %v466 = vsel %vm465, %v457, %v462
        %v467 = vmul.f32 %v450, %v466
        %v469 = vperm.slane %v436, 0
        %v471 = vmul.f32 %v469, %v467
        %v473 = vperm.slane %v437, 0
        %v475 = vadd.f32 %v471, %v473
        %v476 = vld [vmem:[%s3] sm:$0xff]
        %v477 = vld [vmem:[%s3 + $0x8] sm:$0xff]
        %v478 = vld [vmem:[%s3 + $0x10] sm:$0xff]
        %v479 = vld [vmem:[%s3 + $0x18] sm:$0xff]
        %v481 = vsel %vm438, %v475, 0
        %483 = vmatpush.msra.mxu0 0.0
        %484 = vmatpush.msra.mxu0 0.0
        %485 = vmatpush.msra.mxu0 0.0
        %486 = vmatpush.msra.mxu0 0.0
        %487 = vmatpush.msra.mxu0 0.0
        %488 = vmatpush.msra.mxu0 0.0
        %489 = vmatpush.msra.mxu0 0.0
        %490 = vmatpush.msra.mxu0 0.0
        %491 = vmatpush.msra.mxu0 0.0
        %492 = vmatpush.msra.mxu0 0.0
        %493 = vmatpush.msra.mxu0 0.0
        %494 = vmatpush.msra.mxu0 0.0
        %495 = vmatpush.msra.mxu0 %v479
        %496 = vmatpush.msra.mxu0 %v478
        %497 = vmatpush.msra.mxu0 %v477
        %498 = vmatpush.msra.mxu0 %v476
        %499 = vmatmul.f32.gmra.mxu0 %v481
        %v500 = vpop.f32.mrf.mxu0
        %v501 = vadd.f32 0.0, %v500
        %502 = vdwg.mxu0
        %v503 = vmul.f32 %v501, 0.35355338
        %505 = vrot.lane.b32.xlu0 %v501, 96
        %v506 = vpop.permute.xlu0 %505
        %s508 = scalar_lea.vmem [#allocation2], %s434
        %509 = vst.msk [vmem:[%s508] sm:$0xff] %vm438, %v506
        %510 = vrot.lane.b32.xlu0 %v501, 64
        %v511 = vpop.permute.xlu0 %510
        %s513 = scalar_lea.vmem [#allocation3], %s434
        %514 = vst.msk [vmem:[%s513] sm:$0xff] %vm438, %v511
        %v515 = vlaneseq
        %v516 = vshrl.u32 %v515, 7
        %v517 = vlaneseq
        %v518 = vand.u32 %v517, 127
        %vm519 = vcmp.gt.s32.totalorder %v518, %v516
        %v520 = vsel %vm519, -1e+30, 0.0
        %s521 = sadd.s32 %s31, 1
        // While loop
        $region69: #{_transformer_block_rff_impl.1} parent=67 // loop_pre_header
          _
        $region70: #{_transformer_block_rff_impl.1} parent=67 // loop_header
          %s523 = sphi 0, %s525
          %p524 = scmp.ge.s32.totalorder %s523, %s521
          %v528 = vphi -1e+30, %v572
          %v529 = vphi 0.0, %v583
          %v530 = vphi 0.0, %v608
        $region71: #{_transformer_block_rff_impl.1} parent=67 // loop_header_branch
          %527 = sbr.rel (%p524) target = $region75
        $region72: #{_transformer_block_rff_impl.1} parent=67 // loop_body
          %s531 = smul.u32 %s523, 8
          %s532 = scalar_lea.vmem [#allocation2], %s531
          %v533 = vld [vmem:[%s532] sm:$0xff]
          %s534 = scalar_lea.vmem [#allocation3], %s531
          %v535 = vld [vmem:[%s534] sm:$0xff]
          %vm536 = vcmask 64512
          %v538 = vsel %vm536, %v503, 0
          %v541 = vsel %vm536, %v533, 0
          %543 = vmatpush.xpose.msra.mxu0 0.0
          %544 = vmatpush.xpose.msra.mxu0 0.0
          %545 = vmatpush.xpose.msra.mxu0 0.0
          %546 = vmatpush.xpose.msra.mxu0 0.0
          %547 = vmatpush.xpose.msra.mxu0 0.0
          %548 = vmatpush.xpose.msra.mxu0 0.0
          %549 = vmatpush.xpose.msra.mxu0 0.0
          %550 = vmatpush.xpose.msra.mxu0 0.0
          %551 = vmatpush.xpose.msra.mxu0 0.0
          %552 = vmatpush.xpose.msra.mxu0 0.0
          %553 = vmatpush.xpose.msra.mxu0 0.0
          %554 = vmatpush.xpose.msra.mxu0 0.0
          %555 = vmatpush.xpose.msra.mxu0 0.0
          %556 = vmatpush.xpose.msra.mxu0 0.0
          %557 = vmatpush.xpose.msra.mxu0 0.0
          %558 = vmatpush.xpose.msra.mxu0 %v541
          %559 = vmatmul.f32.gmra.mxu0 %v538
          %v560 = vpop.f32.mrf.mxu0
          %v561 = vadd.f32 0.0, %v560
          %562 = vdwg.mxu0
          %p563 = scmp.eq.s32.totalorder %s523, %s31
          %v564 = vadd.f32 %v561, %v520
          %s565 = scalar_select %p563, 1, 0
          %v566 = vstv %s565
          %vm567 = vcmp.eq.s32.totalorder %v566, 1
          %v568 = vsel %vm567, %v564, %v561
          %v569 = vsel %vm536, %v568, -inf
          %570 = vmax.xlane.f32.xlu0 %v569
          %v571 = vpop.xlane.xlu0 %570
          %v572 = vmax.f32 %v528, %v571
          %v573 = vsub.f32 %v528, %v572
          %v574 = vmul.f32 %v573, 1.442695
          %v575 = vpow.pop %v574
          %v576 = vsub.f32 %v568, %v572
          %v577 = vmul.f32 %v576, 1.442695
          %v578 = vpow.pop %v577
          %v579 = vmul.f32 %v575, %v529
          %v580 = vsel %vm536, %v578, 0.0
          %581 = vadd.xlane.f32.xlu0 %v580
          %v582 = vpop.xlane.xlu0 %581
          %v583 = vadd.f32 %v579, %v582
          %v584 = vmul.f32 %v575, %v530
          %v586 = vsel %vm536, %v578, 0
          %588 = vmatpush.msra.mxu0 0.0
          %589 = vmatpush.msra.mxu0 0.0
          %590 = vmatpush.msra.mxu0 0.0
          %591 = vmatpush.msra.mxu0 0.0
          %592 = vmatpush.msra.mxu0 0.0
          %593 = vmatpush.msra.mxu0 0.0
          %594 = vmatpush.msra.mxu0 0.0
          %595 = vmatpush.msra.mxu0 0.0
          %596 = vmatpush.msra.mxu0 0.0
          %597 = vmatpush.msra.mxu0 0.0
          %598 = vmatpush.msra.mxu0 0.0
          %599 = vmatpush.msra.mxu0 0.0
          %600 = vmatpush.msra.mxu0 0.0
          %601 = vmatpush.msra.mxu0 0.0
          %602 = vmatpush.msra.mxu0 0.0
          %603 = vmatpush.msra.mxu0 %v535
          %604 = vmatmul.f32.gmra.mxu0 %v586
          %v605 = vpop.f32.mrf.mxu0
          %v606 = vadd.f32 0.0, %v605
          %607 = vdwg.mxu0
          %v608 = vadd.f32 %v584, %v606
        $region73: #{_transformer_block_rff_impl.1} parent=67 // loop_footer
          %s525 = sadd.s32 %s523, 1
        $region74: #{_transformer_block_rff_impl.1} parent=67 // loop_footer_branch
          %522 = sbr.rel target = $region70
        $region75: #{_transformer_block_rff_impl.1} parent=67 // loop_exit
          _
        %v609 = vrcp.pop %v529
        %v610 = vmul.f32 %v529, %v609
        %v611 = vsub.f32 1.0, %v610
        %v612 = vmul.f32 %v609, %v611
        %v613 = vadd.f32 %v609, %v612
        %vm614 = vweird.f32 %v529
        %vm615 = vweird.f32 %v609
        %vm616 = vmor %vm614, %vm615
        %v617 = vsel %vm616, %v609, %v613
        %v618 = vand.u32 2147483647, %v529
        %vm619 = vcmp.eq.f32.partialorder %v618, 8.507059e+37
        %v620 = vand.u32 %v529, 2147483648
        %v621 = vor.u32 1.1754944e-38, %v620
        %v622 = vsel %vm619, %v621, %v617
        %v623 = vmul.f32 1.0, %v622
        %v624 = vmul.f32 %v530, %v623
        %vm625 = vcmask 64512
        %626 = vst.msk [vmem:[#allocation4] sm:$0xff] %vm625, %v624
        // While loop
        $region76: #{_transformer_block_rff_impl.1} parent=67 // loop_pre_header
          _
        $region77: #{_transformer_block_rff_impl.1} parent=67 // loop_header
          %s628 = sphi 0, %s630
          %p629 = scmp.ge.s32.totalorder %s628, %s521
          %v633 = vphi -1e+30, %v680
          %v634 = vphi 0.0, %v691
          %v635 = vphi 0.0, %v720
        $region78: #{_transformer_block_rff_impl.1} parent=67 // loop_header_branch
          %632 = sbr.rel (%p629) target = $region82
        $region79: #{_transformer_block_rff_impl.1} parent=67 // loop_body
          %s636 = smul.u32 %s628, 8
          %s637 = scalar_lea.vmem [#allocation2], %s636
          %v638 = vld [vmem:[%s637] sm:$0xff]
          %s639 = scalar_lea.vmem [#allocation3], %s636
          %v640 = vld [vmem:[%s639] sm:$0xff]
          %642 = vrot.lane.b32.xlu0 %v503, 120
          %v643 = vpop.permute.xlu0 %642
          %645 = vrot.lane.b32.xlu0 %v638, 120
          %v646 = vpop.permute.xlu0 %645
          %v647 = vsel %vm625, %v643, 0
          %v649 = vsel %vm625, %v646, 0
          %651 = vmatpush.xpose.msra.mxu0 0.0
          %652 = vmatpush.xpose.msra.mxu0 0.0
          %653 = vmatpush.xpose.msra.mxu0 0.0
          %654 = vmatpush.xpose.msra.mxu0 0.0
          %655 = vmatpush.xpose.msra.mxu0 0.0
          %656 = vmatpush.xpose.msra.mxu0 0.0
          %657 = vmatpush.xpose.msra.mxu0 0.0
          %658 = vmatpush.xpose.msra.mxu0 0.0
          %659 = vmatpush.xpose.msra.mxu0 0.0
          %660 = vmatpush.xpose.msra.mxu0 0.0
          %661 = vmatpush.xpose.msra.mxu0 0.0
          %662 = vmatpush.xpose.msra.mxu0 0.0
          %663 = vmatpush.xpose.msra.mxu0 0.0
          %664 = vmatpush.xpose.msra.mxu0 0.0
          %665 = vmatpush.xpose.msra.mxu0 0.0
          %666 = vmatpush.xpose.msra.mxu0 %v649
          %667 = vmatmul.f32.gmra.mxu0 %v647
          %v668 = vpop.f32.mrf.mxu0
          %v669 = vadd.f32 0.0, %v668
          %670 = vdwg.mxu0
          %p671 = scmp.eq.s32.totalorder %s628, %s31
          %v672 = vadd.f32 %v669, %v520
          %s673 = scalar_select %p671, 1, 0
          %v674 = vstv %s673
          %vm675 = vcmp.eq.s32.totalorder %v674, 1
          %v676 = vsel %vm675, %v672, %v669
          %v677 = vsel %vm625, %v676, -inf
          %678 = vmax.xlane.f32.xlu0 %v677
          %v679 = vpop.xlane.xlu0 %678
          %v680 = vmax.f32 %v633, %v679
          %v681 = vsub.f32 %v633, %v680
          %v682 = vmul.f32 %v681, 1.442695
          %v683 = vpow.pop %v682
          %v684 = vsub.f32 %v676, %v680
          %v685 = vmul.f32 %v684, 1.442695
          %v686 = vpow.pop %v685
          %v687 = vmul.f32 %v683, %v634
          %v688 = vsel %vm625, %v686, 0.0
          %689 = vadd.xlane.f32.xlu0 %v688
          %v690 = vpop.xlane.xlu0 %689
          %v691 = vadd.f32 %v687, %v690
          %v692 = vmul.f32 %v683, %v635
          %694 = vrot.lane.b32.xlu0 %v640, 120
          %v695 = vpop.permute.xlu0 %694
          %v698 = vsel %vm625, %v686, 0
          %700 = vmatpush.msra.mxu0 0.0
          %701 = vmatpush.msra.mxu0 0.0
          %702 = vmatpush.msra.mxu0 0.0
          %703 = vmatpush.msra.mxu0 0.0
          %704 = vmatpush.msra.mxu0 0.0
          %705 = vmatpush.msra.mxu0 0.0
          %706 = vmatpush.msra.mxu0 0.0
          %707 = vmatpush.msra.mxu0 0.0
          %708 = vmatpush.msra.mxu0 0.0
          %709 = vmatpush.msra.mxu0 0.0
          %710 = vmatpush.msra.mxu0 0.0
          %711 = vmatpush.msra.mxu0 0.0
          %712 = vmatpush.msra.mxu0 0.0
          %713 = vmatpush.msra.mxu0 0.0
          %714 = vmatpush.msra.mxu0 0.0
          %715 = vmatpush.msra.mxu0 %v695
          %716 = vmatmul.f32.gmra.mxu0 %v698
          %v717 = vpop.f32.mrf.mxu0
          %v718 = vadd.f32 0.0, %v717
          %719 = vdwg.mxu0
          %v720 = vadd.f32 %v692, %v718
        $region80: #{_transformer_block_rff_impl.1} parent=67 // loop_footer
          %s630 = sadd.s32 %s628, 1
        $region81: #{_transformer_block_rff_impl.1} parent=67 // loop_footer_branch
          %627 = sbr.rel target = $region77
        $region82: #{_transformer_block_rff_impl.1} parent=67 // loop_exit
          _
        %v721 = vrcp.pop %v634
        %v722 = vmul.f32 %v634, %v721
        %v723 = vsub.f32 1.0, %v722
        %v724 = vmul.f32 %v721, %v723
        %v725 = vadd.f32 %v721, %v724
        %vm726 = vweird.f32 %v634
        %vm727 = vweird.f32 %v721
        %vm728 = vmor %vm726, %vm727
        %v729 = vsel %vm728, %v721, %v725
        %v730 = vand.u32 2147483647, %v634
        %vm731 = vcmp.eq.f32.partialorder %v730, 8.507059e+37
        %v732 = vand.u32 %v634, 2147483648
        %v733 = vor.u32 1.1754944e-38, %v732
        %v734 = vsel %vm731, %v733, %v729
        %v735 = vmul.f32 1.0, %v734
        %v736 = vmul.f32 %v635, %v735
        %738 = vrot.lane.b32.xlu0 %v736, 8
        %v739 = vpop.permute.xlu0 %738
        %vm741 = vcmask 130112
        %742 = vst.msk [vmem:[#allocation4] sm:$0xff] %vm741, %v739
        // While loop
        $region83: #{_transformer_block_rff_impl.1} parent=67 // loop_pre_header
          _
        $region84: #{_transformer_block_rff_impl.1} parent=67 // loop_header
          %s744 = sphi 0, %s746
          %p745 = scmp.ge.s32.totalorder %s744, %s521
          %v749 = vphi -1e+30, %v796
          %v750 = vphi 0.0, %v807
          %v751 = vphi 0.0, %v836
        $region85: #{_transformer_block_rff_impl.1} parent=67 // loop_header_branch
          %748 = sbr.rel (%p745) target = $region89
        $region86: #{_transformer_block_rff_impl.1} parent=67 // loop_body
          %s752 = smul.u32 %s744, 8
          %s753 = scalar_lea.vmem [#allocation2], %s752
          %v754 = vld [vmem:[%s753] sm:$0xff]
          %s755 = scalar_lea.vmem [#allocation3], %s752
          %v756 = vld [vmem:[%s755] sm:$0xff]
          %758 = vrot.lane.b32.xlu0 %v503, 112
          %v759 = vpop.permute.xlu0 %758
          %761 = vrot.lane.b32.xlu0 %v754, 112
          %v762 = vpop.permute.xlu0 %761
          %v763 = vsel %vm625, %v759, 0
          %v765 = vsel %vm625, %v762, 0
          %767 = vmatpush.xpose.msra.mxu0 0.0
          %768 = vmatpush.xpose.msra.mxu0 0.0
          %769 = vmatpush.xpose.msra.mxu0 0.0
          %770 = vmatpush.xpose.msra.mxu0 0.0
          %771 = vmatpush.xpose.msra.mxu0 0.0
          %772 = vmatpush.xpose.msra.mxu0 0.0
          %773 = vmatpush.xpose.msra.mxu0 0.0
          %774 = vmatpush.xpose.msra.mxu0 0.0
          %775 = vmatpush.xpose.msra.mxu0 0.0
          %776 = vmatpush.xpose.msra.mxu0 0.0
          %777 = vmatpush.xpose.msra.mxu0 0.0
          %778 = vmatpush.xpose.msra.mxu0 0.0
          %779 = vmatpush.xpose.msra.mxu0 0.0
          %780 = vmatpush.xpose.msra.mxu0 0.0
          %781 = vmatpush.xpose.msra.mxu0 0.0
          %782 = vmatpush.xpose.msra.mxu0 %v765
          %783 = vmatmul.f32.gmra.mxu0 %v763
          %v784 = vpop.f32.mrf.mxu0
          %v785 = vadd.f32 0.0, %v784
          %786 = vdwg.mxu0
          %p787 = scmp.eq.s32.totalorder %s744, %s31
          %v788 = vadd.f32 %v785, %v520
          %s789 = scalar_select %p787, 1, 0
          %v790 = vstv %s789
          %vm791 = vcmp.eq.s32.totalorder %v790, 1
          %v792 = vsel %vm791, %v788, %v785
          %v793 = vsel %vm625, %v792, -inf
          %794 = vmax.xlane.f32.xlu0 %v793
          %v795 = vpop.xlane.xlu0 %794
          %v796 = vmax.f32 %v749, %v795
          %v797 = vsub.f32 %v749, %v796
          %v798 = vmul.f32 %v797, 1.442695
          %v799 = vpow.pop %v798
          %v800 = vsub.f32 %v792, %v796
          %v801 = vmul.f32 %v800, 1.442695
          %v802 = vpow.pop %v801
          %v803 = vmul.f32 %v799, %v750
          %v804 = vsel %vm625, %v802, 0.0
          %805 = vadd.xlane.f32.xlu0 %v804
          %v806 = vpop.xlane.xlu0 %805
          %v807 = vadd.f32 %v803, %v806
          %v808 = vmul.f32 %v799, %v751
          %810 = vrot.lane.b32.xlu0 %v756, 112
          %v811 = vpop.permute.xlu0 %810
          %v814 = vsel %vm625, %v802, 0
          %816 = vmatpush.msra.mxu0 0.0
          %817 = vmatpush.msra.mxu0 0.0
          %818 = vmatpush.msra.mxu0 0.0
          %819 = vmatpush.msra.mxu0 0.0
          %820 = vmatpush.msra.mxu0 0.0
          %821 = vmatpush.msra.mxu0 0.0
          %822 = vmatpush.msra.mxu0 0.0
          %823 = vmatpush.msra.mxu0 0.0
          %824 = vmatpush.msra.mxu0 0.0
          %825 = vmatpush.msra.mxu0 0.0
          %826 = vmatpush.msra.mxu0 0.0
          %827 = vmatpush.msra.mxu0 0.0
          %828 = vmatpush.msra.mxu0 0.0
          %829 = vmatpush.msra.mxu0 0.0
          %830 = vmatpush.msra.mxu0 0.0
          %831 = vmatpush.msra.mxu0 %v811
          %832 = vmatmul.f32.gmra.mxu0 %v814
          %v833 = vpop.f32.mrf.mxu0
          %v834 = vadd.f32 0.0, %v833
          %835 = vdwg.mxu0
          %v836 = vadd.f32 %v808, %v834
        $region87: #{_transformer_block_rff_impl.1} parent=67 // loop_footer
          %s746 = sadd.s32 %s744, 1
        $region88: #{_transformer_block_rff_impl.1} parent=67 // loop_footer_branch
          %743 = sbr.rel target = $region84
        $region89: #{_transformer_block_rff_impl.1} parent=67 // loop_exit
          _
        %v837 = vrcp.pop %v750
        %v838 = vmul.f32 %v750, %v837
        %v839 = vsub.f32 1.0, %v838
        %v840 = vmul.f32 %v837, %v839
        %v841 = vadd.f32 %v837, %v840
        %vm842 = vweird.f32 %v750
        %vm843 = vweird.f32 %v837
        %vm844 = vmor %vm842, %vm843
        %v845 = vsel %vm844, %v837, %v841
        %v846 = vand.u32 2147483647, %v750
        %vm847 = vcmp.eq.f32.partialorder %v846, 8.507059e+37
        %v848 = vand.u32 %v750, 2147483648
        %v849 = vor.u32 1.1754944e-38, %v848
        %v850 = vsel %vm847, %v849, %v845
        %v851 = vmul.f32 1.0, %v850
        %v852 = vmul.f32 %v751, %v851
        %854 = vrot.lane.b32.xlu0 %v852, 16
        %v855 = vpop.permute.xlu0 %854
        %vm857 = vcmask 195712
        %858 = vst.msk [vmem:[#allocation4] sm:$0xff] %vm857, %v855
        // While loop
        $region90: #{_transformer_block_rff_impl.1} parent=67 // loop_pre_header
          _
        $region91: #{_transformer_block_rff_impl.1} parent=67 // loop_header
          %s860 = sphi 0, %s862
          %p861 = scmp.ge.s32.totalorder %s860, %s521
          %v865 = vphi -1e+30, %v912
          %v866 = vphi 0.0, %v923
          %v867 = vphi 0.0, %v952
        $region92: #{_transformer_block_rff_impl.1} parent=67 // loop_header_branch
          %864 = sbr.rel (%p861) target = $region96
        $region93: #{_transformer_block_rff_impl.1} parent=67 // loop_body
          %s868 = smul.u32 %s860, 8
          %s869 = scalar_lea.vmem [#allocation2], %s868
          %v870 = vld [vmem:[%s869] sm:$0xff]
          %s871 = scalar_lea.vmem [#allocation3], %s868
          %v872 = vld [vmem:[%s871] sm:$0xff]
          %874 = vrot.lane.b32.xlu0 %v503, 104
          %v875 = vpop.permute.xlu0 %874
          %877 = vrot.lane.b32.xlu0 %v870, 104
          %v878 = vpop.permute.xlu0 %877
          %v879 = vsel %vm625, %v875, 0
          %v881 = vsel %vm625, %v878, 0
          %883 = vmatpush.xpose.msra.mxu0 0.0
          %884 = vmatpush.xpose.msra.mxu0 0.0
          %885 = vmatpush.xpose.msra.mxu0 0.0
          %886 = vmatpush.xpose.msra.mxu0 0.0
          %887 = vmatpush.xpose.msra.mxu0 0.0
          %888 = vmatpush.xpose.msra.mxu0 0.0
          %889 = vmatpush.xpose.msra.mxu0 0.0
          %890 = vmatpush.xpose.msra.mxu0 0.0
          %891 = vmatpush.xpose.msra.mxu0 0.0
          %892 = vmatpush.xpose.msra.mxu0 0.0
          %893 = vmatpush.xpose.msra.mxu0 0.0
          %894 = vmatpush.xpose.msra.mxu0 0.0
          %895 = vmatpush.xpose.msra.mxu0 0.0
          %896 = vmatpush.xpose.msra.mxu0 0.0
          %897 = vmatpush.xpose.msra.mxu0 0.0
          %898 = vmatpush.xpose.msra.mxu0 %v881
          %899 = vmatmul.f32.gmra.mxu0 %v879
          %v900 = vpop.f32.mrf.mxu0
          %v901 = vadd.f32 0.0, %v900
          %902 = vdwg.mxu0
          %p903 = scmp.eq.s32.totalorder %s860, %s31
          %v904 = vadd.f32 %v901, %v520
          %s905 = scalar_select %p903, 1, 0
          %v906 = vstv %s905
          %vm907 = vcmp.eq.s32.totalorder %v906, 1
          %v908 = vsel %vm907, %v904, %v901
          %v909 = vsel %vm625, %v908, -inf
          %910 = vmax.xlane.f32.xlu0 %v909
          %v911 = vpop.xlane.xlu0 %910
          %v912 = vmax.f32 %v865, %v911
          %v913 = vsub.f32 %v865, %v912
          %v914 = vmul.f32 %v913, 1.442695
          %v915 = vpow.pop %v914
          %v916 = vsub.f32 %v908, %v912
          %v917 = vmul.f32 %v916, 1.442695
          %v918 = vpow.pop %v917
          %v919 = vmul.f32 %v915, %v866
          %v920 = vsel %vm625, %v918, 0.0
          %921 = vadd.xlane.f32.xlu0 %v920
          %v922 = vpop.xlane.xlu0 %921
          %v923 = vadd.f32 %v919, %v922
          %v924 = vmul.f32 %v915, %v867
          %926 = vrot.lane.b32.xlu0 %v872, 104
          %v927 = vpop.permute.xlu0 %926
          %v930 = vsel %vm625, %v918, 0
          %932 = vmatpush.msra.mxu0 0.0
          %933 = vmatpush.msra.mxu0 0.0
          %934 = vmatpush.msra.mxu0 0.0
          %935 = vmatpush.msra.mxu0 0.0
          %936 = vmatpush.msra.mxu0 0.0
          %937 = vmatpush.msra.mxu0 0.0
          %938 = vmatpush.msra.mxu0 0.0
          %939 = vmatpush.msra.mxu0 0.0
          %940 = vmatpush.msra.mxu0 0.0
          %941 = vmatpush.msra.mxu0 0.0
          %942 = vmatpush.msra.mxu0 0.0
          %943 = vmatpush.msra.mxu0 0.0
          %944 = vmatpush.msra.mxu0 0.0
          %945 = vmatpush.msra.mxu0 0.0
          %946 = vmatpush.msra.mxu0 0.0
          %947 = vmatpush.msra.mxu0 %v927
          %948 = vmatmul.f32.gmra.mxu0 %v930
          %v949 = vpop.f32.mrf.mxu0
          %v950 = vadd.f32 0.0, %v949
          %951 = vdwg.mxu0
          %v952 = vadd.f32 %v924, %v950
        $region94: #{_transformer_block_rff_impl.1} parent=67 // loop_footer
          %s862 = sadd.s32 %s860, 1
        $region95: #{_transformer_block_rff_impl.1} parent=67 // loop_footer_branch
          %859 = sbr.rel target = $region91
        $region96: #{_transformer_block_rff_impl.1} parent=67 // loop_exit
          _
        %v953 = vrcp.pop %v866
        %v954 = vmul.f32 %v866, %v953
        %v955 = vsub.f32 1.0, %v954
        %v956 = vmul.f32 %v953, %v955
        %v957 = vadd.f32 %v953, %v956
        %vm958 = vweird.f32 %v866
        %vm959 = vweird.f32 %v953
        %vm960 = vmor %vm958, %vm959
        %v961 = vsel %vm960, %v953, %v957
        %v962 = vand.u32 2147483647, %v866
        %vm963 = vcmp.eq.f32.partialorder %v962, 8.507059e+37
        %v964 = vand.u32 %v866, 2147483648
        %v965 = vor.u32 1.1754944e-38, %v964
        %v966 = vsel %vm963, %v965, %v961
        %v967 = vmul.f32 1.0, %v966
        %v968 = vmul.f32 %v867, %v967
        %970 = vrot.lane.b32.xlu0 %v968, 24
        %v971 = vpop.permute.xlu0 %970
        %vm973 = vcmask 261312
        %974 = vst.msk [vmem:[#allocation4] sm:$0xff] %vm973, %v971
        %v975 = vld [vmem:[#allocation4] sm:$0xff]
        %v976 = vld [vmem:[%s4] sm:$0xff]
        %v977 = vld [vmem:[%s4 + $0x8] sm:$0xff]
        %v978 = vld [vmem:[%s4 + $0x10] sm:$0xff]
        %v979 = vld [vmem:[%s4 + $0x18] sm:$0xff]
        %v980 = vld [vmem:[%s5] sm:$0x1]
        %v982 = vperm.slane %v980, 0
        %v985 = vsel %vm438, %v975, 0
        %987 = vmatpush.msra.mxu0 0.0
        %988 = vmatpush.msra.mxu0 0.0
        %989 = vmatpush.msra.mxu0 0.0
        %990 = vmatpush.msra.mxu0 0.0
        %991 = vmatpush.msra.mxu0 0.0
        %992 = vmatpush.msra.mxu0 0.0
        %993 = vmatpush.msra.mxu0 0.0
        %994 = vmatpush.msra.mxu0 0.0
        %995 = vmatpush.msra.mxu0 0.0
        %996 = vmatpush.msra.mxu0 0.0
        %997 = vmatpush.msra.mxu0 0.0
        %998 = vmatpush.msra.mxu0 0.0
        %999 = vmatpush.msra.mxu0 %v979
        %1000 = vmatpush.msra.mxu0 %v978
        %1001 = vmatpush.msra.mxu0 %v977
        %1002 = vmatpush.msra.mxu0 %v976
        %1003 = vmatmul.f32.gmra.mxu0 %v985
        %v1004 = vpop.f32.mrf.mxu0
        %v1005 = vadd.f32 %v982, %v1004
        %1006 = vdwg.mxu0
        %v1007 = vadd.f32 %v1005, %v435
        %v1008 = vld [vmem:[%s6] sm:$0x1]
        %v1009 = vld [vmem:[%s7] sm:$0x1]
        %v1010 = vsel %vm438, %v1007, 0.0
        %1011 = vadd.xlane.f32.xlu0 %v1010
        %v1012 = vpop.xlane.xlu0 %1011
        %v1013 = vmul.f32 %v1012, %v448
        %v1014 = vsub.f32 %v1007, %v1013
        %v1015 = vmul.f32 %v1014, %v1014
        %v1016 = vsel %vm438, %v1015, 0.0
        %1017 = vadd.xlane.f32.xlu0 %v1016
        %v1018 = vpop.xlane.xlu0 %1017
        %v1019 = vmul.f32 %v1018, %v448
        %v1020 = vadd.f32 %v1019, 1e-05
        %v1021 = vrsqrt.pop %v1020
        %v1022 = vmul.f32 %v1021, %v1020
        %v1023 = vmul.f32 %v1022, %v1021
        %v1024 = vmul.f32 0.5, %v1023
        %v1025 = vsub.f32 1.5, %v1024
        %v1026 = vmul.f32 %v1021, %v1025
        %vm1027 = vweird.f32 %v1020
        %vm1028 = vweird.f32 %v1021
        %vm1029 = vmor %vm1027, %vm1028
        %v1030 = vsel %vm1029, %v1021, %v1026
        %v1031 = vmul.f32 %v1014, %v1030
        %v1033 = vperm.slane %v1008, 0
        %v1035 = vmul.f32 %v1033, %v1031
        %v1037 = vperm.slane %v1009, 0
        %v1039 = vadd.f32 %v1035, %v1037
        %v1040 = vld [vmem:[%s8] sm:$0xff]
        %v1041 = vld [vmem:[%s8 + $0x8] sm:$0xff]
        %v1042 = vld [vmem:[%s8 + $0x10] sm:$0xff]
        %v1043 = vld [vmem:[%s8 + $0x18] sm:$0xff]
        %v1044 = vld [vmem:[%s9] sm:$0x1]
        %v1046 = vperm.slane %v1044, 0
        %v1049 = vsel %vm438, %v1039, 0
        %1051 = vmatpush.msra.mxu0 0.0
        %1052 = vmatpush.msra.mxu0 0.0
        %1053 = vmatpush.msra.mxu0 0.0
        %1054 = vmatpush.msra.mxu0 0.0
        %1055 = vmatpush.msra.mxu0 0.0
        %1056 = vmatpush.msra.mxu0 0.0
        %1057 = vmatpush.msra.mxu0 0.0
        %1058 = vmatpush.msra.mxu0 0.0
        %1059 = vmatpush.msra.mxu0 0.0
        %1060 = vmatpush.msra.mxu0 0.0
        %1061 = vmatpush.msra.mxu0 0.0
        %1062 = vmatpush.msra.mxu0 0.0
        %1063 = vmatpush.msra.mxu0 %v1043
        %1064 = vmatpush.msra.mxu0 %v1042
        %1065 = vmatpush.msra.mxu0 %v1041
        %1066 = vmatpush.msra.mxu0 %v1040
        %1067 = vmatmul.f32.gmra.mxu0 %v1049
        %v1068 = vpop.f32.mrf.mxu0
        %v1069 = vadd.f32 %v1046, %v1068
        %1070 = vdwg.mxu0
        %v1071 = vand.u32 2147483647, %v1069
        %vm1072 = vcmp.le.f32.partialorder %v1071, 0.7853982
        %vm1073 = vcmp.lt.s32.totalorder %v1069, 0
        %v1074 = vand.u32 %v1069, 2139095040
        %v1075 = vshrl.u32 %v1074, 23
        %v1076 = vsub.s32 %v1075, 127
        %v1077 = vand.u32 2147483647, %v1069
        %v1078 = vand.u32 %v1077, 8388607
        %v1079 = vor.u32 %v1078, 8388608
        %v1080 = vsub.s32 0, %v1079
        %v1081 = vadd.s32 %v1076, 1
        %vm1082 = vcmp.gt.s32.totalorder %v1081, 0
        %v1083 = vsel %vm1082, %v1081, 0
        %v1084 = vshrl.u32 %v1083, 5
        %v1085 = vand.u32 %v1083, 31
        %v1086 = vsub.s32 32, %v1085
        %v1087 = vshrl.u32 683565275, %v1086
        %v1088 = vshll.u32 683565275, %v1085
        %v1089 = vshrl.u32 2475754826, %v1086
        %v1090 = vor.u32 %v1088, %v1089
        %v1091 = vshll.u32 2475754826, %v1085
        %v1092 = vshrl.u32 2131351028, %v1086
        %v1093 = vor.u32 %v1091, %v1092
        %v1094 = vshll.u32 2131351028, %v1085
        %v1095 = vshrl.u32 2102212464, %v1086
        %v1096 = vor.u32 %v1094, %v1095
        %v1097 = vshll.u32 2102212464, %v1085
        %v1098 = vshrl.u32 920167782, %v1086
        %v1099 = vor.u32 %v1097, %v1098
        %v1100 = vshll.u32 920167782, %v1085
        %v1101 = vshrl.u32 1326507024, %v1086
        %v1102 = vor.u32 %v1100, %v1101
        %vm1103 = vcmp.lt.s32.totalorder %v1084, 1
        %vm1104 = vcmp.lt.s32.totalorder %v1084, 2
        %vm1105 = vcmp.lt.s32.totalorder %v1084, 3
        %vm1106 = vcmp.lt.s32.totalorder %v1084, 4
        %v1107 = vsel %vm1103, %v1087, %v1090
        %v1108 = vsel %vm1106, %v1096, 2102212464
        %v1109 = vsel %vm1105, %v1093, %v1108
        %v1110 = vsel %vm1104, %v1107, %v1109
        %v1111 = vsel %vm1103, %v1090, %v1093
        %v1112 = vsel %vm1106, %v1099, 920167782
        %v1113 = vsel %vm1105, %v1096, %v1112
        %v1114 = vsel %vm1104, %v1111, %v1113
        %v1115 = vsel %vm1103, %v1093, %v1096
        %v1116 = vsel %vm1106, %v1102, 1326507024
        %v1117 = vsel %vm1105, %v1099, %v1116
        %v1118 = vsel %vm1104, %v1115, %v1117
        %v1119 = vshll.u32 %v1079, 8
        %v1120 = vand.u32 %v1119, 65535
        %v1121 = vshrl.u32 %v1119, 16
        %v1122 = vand.u32 %v1118, 65535
        %v1123 = vshrl.u32 %v1118, 16
        %v1124 = vmul.u32 %v1120, %v1122
        %v1125 = vmul.u32 %v1120, %v1123
        %v1126 = vmul.u32 %v1121, %v1122
        %v1127 = vmul.u32 %v1121, %v1123
        %v1128 = vshll.u32 %v1125, 16
        %v1129 = vshrl.u32 %v1125, 16
        %v1130 = vshll.u32 %v1126, 16
        %v1131 = vshrl.u32 %v1126, 16
        %vm1132 = vc.u32 %v1124, %v1128
        %v1133 = vsel %vm1132, 1, 0
        %v1134 = vadd.s32 %v1124, %v1128
        %v1135 = vadd.s32 %v1127, %v1133
        %vm1136 = vc.u32 %v1134, %v1130
        %v1137 = vsel %vm1136, 1, 0
        %v1138 = vadd.s32 %v1134, %v1130
        %v1139 = vadd.s32 %v1135, %v1137
        %v1140 = vadd.s32 %v1139, %v1129
        %v1141 = vadd.s32 %v1140, %v1131
        %v1142 = vand.u32 %v1119, 65535
        %v1143 = vshrl.u32 %v1119, 16
        %v1144 = vand.u32 %v1114, 65535
        %v1145 = vshrl.u32 %v1114, 16
        %v1146 = vmul.u32 %v1142, %v1144
        %v1147 = vmul.u32 %v1142, %v1145
        %v1148 = vmul.u32 %v1143, %v1144
        %v1149 = vmul.u32 %v1143, %v1145
        %v1150 = vshll.u32 %v1147, 16
        %v1151 = vshrl.u32 %v1147, 16
        %v1152 = vshll.u32 %v1148, 16
        %v1153 = vshrl.u32 %v1148, 16
        %vm1154 = vc.u32 %v1146, %v1150
        %v1155 = vsel %vm1154, 1, 0
        %v1156 = vadd.s32 %v1146, %v1150
        %v1157 = vadd.s32 %v1149, %v1155
        %vm1158 = vc.u32 %v1156, %v1152
        %v1159 = vsel %vm1158, 1, 0
        %v1160 = vadd.s32 %v1156, %v1152
        %v1161 = vadd.s32 %v1157, %v1159
        %v1162 = vadd.s32 %v1161, %v1151
        %v1163 = vadd.s32 %v1162, %v1153
        %v1164 = vmul.u32 %v1119, %v1110
        %v1165 = vadd.s32 %v1141, %v1160
        %vm1166 = vc.u32 %v1141, %v1160
        %v1167 = vadd.s32 %v1163, 1
        %v1168 = vsel %vm1166, %v1167, %v1163
        %v1169 = vadd.s32 %v1164, %v1168
        %v1170 = vadd.s32 %v1169, 536870912
        %v1171 = vshrl.u32 %v1170, 30
        %v1172 = vshll.u32 %v1171, 30
        %v1173 = vsub.s32 %v1169, %v1172
        %vm1174 = vcmp.lt.s32.totalorder %v1173, 0
        %v1175 = vsub.s32 0, %v1173
        %v1176 = vsel %vm1174, %v1175, %v1173
        %v1177 = vclz %v1176
        %v1178 = vsub.s32 %v1177, 2
        %vm1179 = vcmp.gt.s32.totalorder 0, %v1178
        %v1180 = vsel %vm1179, 0, %v1178
        %v1181 = vsub.s32 32, %v1180
        %v1182 = vshll.u32 %v1173, %v1180
        %v1183 = vshrl.u32 %v1165, %v1181
        %v1184 = vor.u32 %v1182, %v1183
        %v1185 = vsub.s32 4294967266, %v1180
        %v1186 = vadd.s32 %v1185, 127
        %v1187 = vshll.u32 %v1186, 23
        %v1188 = vor.u32 4788187, %v1187
        %v1189 = vand.u32 2147483647, %v1188
        %v1191 = vcvt.s32.f32 %v1184
        %v1192 = vmul.f32 %v1191, %v1189
        %v1193 = vxor.u32 %v1192, 2147483648
        %v1194 = vsel %vm1073, %v1193, %v1192
        %v1195 = vsub.s32 4, %v1171
        %v1196 = vsel %vm1073, %v1195, %v1171
        %v1197 = vsel %vm1072, %v1069, %v1194
        %v1198 = vsel %vm1072, 0, %v1196
        %v1199 = vmul.f32 %v1197, %v1197
        %v1200 = vmul.f32 %v1199, -0.001358992
        %v1201 = vadd.f32 %v1200, 0.041655596
        %v1202 = vmul.f32 %v1199, %v1201
        %v1203 = vadd.f32 %v1202, -0.4999988
        %v1204 = vmul.f32 %v1199, %v1203
        %v1205 = vadd.f32 1.0, %v1204
        %v1206 = vmul.f32 %v1197, %v1197
        %v1207 = vmul.f32 %v1206, -0.00019511016
        %v1208 = vadd.f32 %v1207, 0.008332121
        %v1209 = vmul.f32 %v1206, %v1208
        %v1210 = vadd.f32 %v1209, -0.16666654
        %v1211 = vmul.f32 %v1206, %v1210
        %v1212 = vadd.f32 %v1211, 1.0
        %v1213 = vmul.f32 %v1212, %v1197
        %vm1214 = vweird.f32 %v1069
        %v1215 = vand.u32 %v1198, 3
        %vm1216 = vcmp.lt.s32.totalorder %v1215, 2
        %vm1217 = vcmp.eq.s32.totalorder %v1215, 0
        %v1218 = vxor.u32 %v1213, 2147483648
        %v1219 = vsel %vm1217, %v1205, %v1218
        %vm1220 = vcmp.eq.s32.totalorder %v1215, 2
        %v1221 = vxor.u32 %v1205, 2147483648
        %v1222 = vsel %vm1220, %v1221, %v1213
        %v1223 = vsel %vm1216, %v1219, %v1222
        %v1224 = vsel %vm1214, nan, %v1223
        %v1225 = vmul.f32 %v1224, 0.125
        %v1226 = vld [vmem:[%s10] sm:$0xff]
        %v1227 = vld [vmem:[%s10 + $0x8] sm:$0xff]
        %v1228 = vld [vmem:[%s10 + $0x10] sm:$0xff]
        %v1229 = vld [vmem:[%s10 + $0x18] sm:$0xff]
        %v1230 = vld [vmem:[%s10 + $0x20] sm:$0xff]
        %v1231 = vld [vmem:[%s10 + $0x28] sm:$0xff]
        %v1232 = vld [vmem:[%s10 + $0x30] sm:$0xff]
        %v1233 = vld [vmem:[%s10 + $0x38] sm:$0xff]
        %v1234 = vld [vmem:[%s10 + $0x40] sm:$0xff]
        %v1235 = vld [vmem:[%s10 + $0x48] sm:$0xff]
        %v1236 = vld [vmem:[%s10 + $0x50] sm:$0xff]
        %v1237 = vld [vmem:[%s10 + $0x58] sm:$0xff]
        %v1238 = vld [vmem:[%s10 + $0x60] sm:$0xff]
        %v1239 = vld [vmem:[%s10 + $0x68] sm:$0xff]
        %v1240 = vld [vmem:[%s10 + $0x70] sm:$0xff]
        %v1241 = vld [vmem:[%s10 + $0x78] sm:$0xff]
        %v1242 = vld [vmem:[%s11] sm:$0x1]
        %v1244 = vperm.slane %v1242, 0
        %1246 = vmatpush.msra.mxu0 %v1241
        %1247 = vmatpush.msra.mxu0 %v1240
        %1248 = vmatpush.msra.mxu0 %v1239
        %1249 = vmatpush.msra.mxu0 %v1238
        %1250 = vmatpush.msra.mxu0 %v1237
        %1251 = vmatpush.msra.mxu0 %v1236
        %1252 = vmatpush.msra.mxu0 %v1235
        %1253 = vmatpush.msra.mxu0 %v1234
        %1254 = vmatpush.msra.mxu0 %v1233
        %1255 = vmatpush.msra.mxu0 %v1232
        %1256 = vmatpush.msra.mxu0 %v1231
        %1257 = vmatpush.msra.mxu0 %v1230
        %1258 = vmatpush.msra.mxu0 %v1229
        %1259 = vmatpush.msra.mxu0 %v1228
        %1260 = vmatpush.msra.mxu0 %v1227
        %1261 = vmatpush.msra.mxu0 %v1226
        %1262 = vmatmul.f32.gmra.mxu0 %v1225
        %v1263 = vpop.f32.mrf.mxu0
        %v1264 = vadd.f32 %v1244, %v1263
        %1265 = vdwg.mxu0
        %v1266 = vadd.f32 %v1264, %v1007
        %1267 = vst.msk [vmem:[%s426] sm:$0xff] %vm438, %v1266
        %s1268 = sand.u32 %s307, 1
        %s1269 = scalar_lea.sflag [#allocation6], %s1268
        %s1270 = sand.u32 %s307, 1
        %s1271 = smul.addr %s1270, 8
        %s1272 = scalar_lea.vmem [#allocation5], %s1271
        // Predicated region
        $region97: #{_transformer_block_rff_impl.1} parent=67 // pred_check
          %p1273 = pneg %p317
        $region98: #{_transformer_block_rff_impl.1} parent=67 // pred_check_branch
          %1275 = sbr.rel (%p1273) target = $region100
        $region99: #{_transformer_block_rff_impl.1} parent=67 // pred_region
          %1277 = vsyncadd %s1269, 0
          %s1278 = sadd.s32 %s31, %s30
          %s1279 = smul.addr %s1278, 8
          %s1280 = scalar_lea.hbm %s12, %s1279
          %s1282 = sshll.u32 %s1272, 4
          %s1283 = int_to_ptr.vmem [resolvable:$true] %s1282
          %s1284 = sshll.u32 %s1280, 4
          %s1285 = int_to_ptr.hbm [resolvable:$true] %s1284
          %1287 = dma.vmem_to_hbm [thread:$0]  %s1283, 128, %s1285, %s1269
        $region100: #{_transformer_block_rff_impl.1} parent=67 // pred_fallthru
          _
      $region68: #{_transformer_block_rff_impl.1} parent=5 // pred_fallthru
        _
      %p1288 = scmp.le.s32.totalorder 2, %s21
      // Predicated region
      $region101: #{_transformer_block_rff_impl.1} parent=5 // pred_check
        %p1289 = pneg %p1288
      $region102: #{_transformer_block_rff_impl.1} parent=5 // pred_check_branch
        %1291 = sbr.rel (%p1289) target = $region104
      $region103: #{_transformer_block_rff_impl.1} parent=5 // pred_region
        %s1292 = ssub.s32 %s21, 2
        // Predicated region
        $region105: #{_transformer_block_rff_impl.1} parent=103 // pred_check
          %p1293 = pneg %p323
        $region106: #{_transformer_block_rff_impl.1} parent=103 // pred_check_branch
          %1295 = sbr.rel (%p1293) target = $region108
        $region107: #{_transformer_block_rff_impl.1} parent=103 // pred_region
          %s1296 = sand.u32 %s308, 1
          %s1297 = scalar_lea.sflag [#allocation6], %s1296
          %s1298 = sand.u32 %s308, 1
          %s1299 = smul.addr %s1298, 8
          %s1300 = scalar_lea.vmem [#allocation5], %s1299
          %1302 = dma.done %s1297, 128
        $region108: #{_transformer_block_rff_impl.1} parent=103 // pred_fallthru
          _
      $region104: #{_transformer_block_rff_impl.1} parent=5 // pred_fallthru
        _
    $region6: #{_transformer_block_rff_impl.1} parent=1 // loop_footer
      %s25 = sadd.s32 1, %s21
    $region7: #{_transformer_block_rff_impl.1} parent=1 // loop_footer_branch
      %20 = sbr.rel target = $region3
    $region8: #{_transformer_block_rff_impl.1} parent=1 // loop_exit
      _
    %1303 = vsyncpa [#allocation6], 1
    %s1304 = scalar_lea.sflag [#allocation6], 1
    %1305 = vsyncpa %s1304, 1

</llo_original>
